<compile_context>
chip_gen: v7x
topology: tpu7x:2x2x1
jax: 0.10.0
libtpu: 0.0.40
codegen_flags: <defaults>
</compile_context>

<pallas_src>
import math

import jax
import jax.numpy as jnp
from jax.experimental import pallas as pl
from jax.experimental.pallas import tpu as pltpu


def _round_up(a, m):
    return (a + m - 1) // m * m


def _vmem_caps():
    """Generation-aware (tile budget, vmem_limit_bytes). Conservative fallback off-TPU."""
    cap = 64 * 1024 * 1024                      # v7x per-TC VMEM (smallest current gen)
    try:
        cap = int(pltpu.get_tpu_info().vmem_capacity_bytes)
    except Exception:
        pass
    budget = min(int(cap * 0.55), 80 * 1024 * 1024)
    vmem_limit = min(int(cap * 0.70), 100 * 1024 * 1024)
    return budget, vmem_limit


def _choose_tile_len(C, Dp, L, Hh, budget_bytes, tile_len=None):
    """Lane-dense L-tile length: multiple of Hh (halo block) that fits the VMEM budget."""
    if tile_len is not None:
        tl = _round_up(tile_len, 128)
    else:
        # Per-column VMEM bytes: double-buffered x/cond/out blocks + f32 in-kernel temps.
        per_col = 80 * C + 4 * Dp
        tl = 128
        for cand in (16384, 8192, 4096, 2048, 1024, 512, 256, 128):
            if cand * per_col <= budget_bytes:
                tl = cand
                break
    tl = max(tl, Hh)
    tl = _round_up(tl, Hh)
    return min(tl, _round_up(L, Hh))


def make_residual_block_kernel(C, dilation, tile_len, halo_len, seq_len):
    d = dilation
    TL = tile_len
    Hh = halo_len
    L = seq_len
    inv_sqrt2 = 1.0 / math.sqrt(2.0)

    def kernel(xc_ref, xl_ref, xr_ref, emb_ref, cond_ref,
               wt_ref, wc_ref, bbig_ref, wout_ref, bout_ref, out_ref):
        t = pl.program_id(1)

        emb = emb_ref[0]                         # (C, 1) f32, constant along time
        x_cur = xc_ref[0]                        # (C, TL) f32
        y_cur = x_cur + emb                      # center tap AND the residual path

        # --- conv halos: Hh lane-aligned columns from the neighboring tiles ---
        xl = xl_ref[0]                           # (C, Hh) = x[t*TL - Hh : t*TL]   (clamped at t=0)
        xr = xr_ref[0]                           # (C, Hh) = x[(t+1)*TL : +Hh]     (clamped at t=T-1)
        # left halo columns feed output cols [0, d); all-zero on the global left edge (t == 0)
        left_cols = jnp.where(t > 0, xl[:, Hh - d:] + emb, 0.0)          # (C, d)
        # right halo columns feed output cols [TL-d, TL); invalid ones masked below
        right_cols = xr[:, :d] + emb                                     # (C, d)

        # --- conv taps via static slices + concat (no rolls, no neighbor full tiles) ---
        if d == TL:
            tap0 = left_cols
            tap2 = right_cols
        else:
            tap0 = jnp.concatenate([left_cols, y_cur[:, :TL - d]], axis=1)
            tap2 = jnp.concatenate([y_cur[:, d:], right_cols], axis=1)
        # right-edge conv zero padding + padded tail: tap2[:, j] = 0 when t*TL + j + d >= L
        col = jax.lax.broadcasted_iota(jnp.int32, (1, TL), 1)
        tap2 = jnp.where(col < (L - d) - t * TL, tap2, 0.0)

        # --- dilated conv + conditioner projection: 4 MXU dots, f32 accumulate ---
        z = jnp.dot(wt_ref[0], tap0.astype(jnp.bfloat16),
                    preferred_element_type=jnp.float32)
        z = z + jnp.dot(wt_ref[1], y_cur.astype(jnp.bfloat16),
                        preferred_element_type=jnp.float32)
        z = z + jnp.dot(wt_ref[2], tap2.astype(jnp.bfloat16),
                        preferred_element_type=jnp.float32)
        z = z + jnp.dot(wc_ref[...], cond_ref[0],
                        preferred_element_type=jnp.float32)
        z = z + bbig_ref[...]                                            # (2C, TL)

        gate = z[:C]
        filt = z[C:]
        after_gate = (jax.nn.sigmoid(gate) * jnp.tanh(filt)).astype(jnp.bfloat16)

        # 1x1 output conv (bf16 operands, f32 accumulate).
        o = jnp.dot(wout_ref[...], after_gate,
                    preferred_element_type=jnp.float32) + bout_ref[...]  # (2C, TL)

        out_ref[0, :C, :] = ((o[:C] + y_cur) * inv_sqrt2).astype(out_ref.dtype)
        out_ref[0, C:, :] = o[C:].astype(out_ref.dtype)

    return kernel


def residual_block_forward(x, diffusion_step_embedding, condition_embedding,
                           params, kernel_size, dilation, tile_len=None):
    """x: (B, C, L) f32; diffusion_step_embedding: (B, C); condition_embedding: (B, D, Lc)."""
    B, C, L = x.shape
    D, Lc = condition_embedding.shape[1], condition_embedding.shape[2]
    K = kernel_size
    d = dilation

    # The PyTorch module (padding=dilation) only preserves the sequence length when
    # 2*padding == dilation*(K-1), i.e. kernel_size == 3 (its residual add fails otherwise).
    assert K == 3, "ResidualBlock is only well-defined for kernel_size == 3"
    assert C % 8 == 0, "channel_size must be a multiple of 8 (16 preferred for bf16 packing)"
    assert 1 <= d < L, "dilation must satisfy 1 <= dilation < L"

    Dp = _round_up(D, 16)                     # bf16 sublane-pack-friendly condition rows
    Hh = _round_up(d, 128)                    # halo block width (lane aligned)
    budget, vmem_limit = _vmem_caps()
    TL = _choose_tile_len(C, Dp, L, Hh, budget, tile_len)
    L_pad = _round_up(L, TL)
    T = L_pad // TL
    NTH = TL // Hh                            # halo blocks per tile
    NBH = L_pad // Hh                         # halo blocks total

    # ---- tiny HBM-side prep (layout plumbing, one pass over small tensors) ----
    x_p = x if L_pad == L else jnp.pad(x, ((0, 0), (0, 0), (0, L_pad - L)))
    emb = diffusion_step_embedding[..., None].astype(jnp.float32)          # (B, C, 1)

    # Replicate raw condition along time to length L (module semantics), then pad.
    nr, rem = L // Lc, L % Lc
    parts = []
    if nr > 0:
        parts.append(jnp.tile(condition_embedding, (1, 1, nr)))
    if rem > 0:
        parts.append(condition_embedding[..., :rem])
    cond_full = parts[0] if len(parts) == 1 else jnp.concatenate(parts, axis=-1)
    if (Dp - D) or (L_pad - L):
        cond_full = jnp.pad(cond_full, ((0, 0), (0, Dp - D), (0, L_pad - L)))
    cond_full = cond_full.astype(jnp.bfloat16)                             # (B, Dp, L_pad)

    # Per-tap conv weights: w_taps[k] = w_dil[:, :, k]  (tap k uses y[., j + (k-1)*d]).
    w_taps = jnp.transpose(params["w_dil"], (2, 0, 1)).astype(jnp.bfloat16)   # (3, 2C, C)
    w_cond = jnp.pad(params["w_cond"], ((0, 0), (0, Dp - D))).astype(jnp.bfloat16)  # (2C, Dp)
    b_big = (params["b_dil"] + params["b_cond"])[:, None].astype(jnp.float32)       # (2C, 1)
    w_out = params["w_out"].astype(jnp.bfloat16)                                    # (2C, C)
    b_out = params["b_out"][:, None].astype(jnp.float32)                            # (2C, 1)

    kernel = make_residual_block_kernel(C, d, TL, Hh, L)

    grid_spec = pltpu.PrefetchScalarGridSpec(
        num_scalar_prefetch=0,
        grid=(B, T),
        in_specs=[
            pl.BlockSpec((1, C, TL), lambda b, t: (b, 0, t)),                              # x (current)
            pl.BlockSpec((1, C, Hh), lambda b, t: (b, 0, jnp.maximum(t * NTH - 1, 0))),    # left halo
            pl.BlockSpec((1, C, Hh), lambda b, t: (b, 0, jnp.minimum((t + 1) * NTH, NBH - 1))),  # right halo
            pl.BlockSpec((1, C, 1), lambda b, t: (b, 0, 0)),                               # diffusion emb
            pl.BlockSpec((1, Dp, TL), lambda b, t: (b, 0, t)),                             # condition (bf16)
            pl.BlockSpec((3, 2 * C, C), lambda b, t: (0, 0, 0)),                           # per-tap conv W
            pl.BlockSpec((2 * C, Dp), lambda b, t: (0, 0)),                                # conditioner W
            pl.BlockSpec((2 * C, 1), lambda b, t: (0, 0)),                                 # fused bias
            pl.BlockSpec((2 * C, C), lambda b, t: (0, 0)),                                 # output W
            pl.BlockSpec((2 * C, 1), lambda b, t: (0, 0)),                                 # output bias
        ],
        out_specs=pl.BlockSpec((1, 2 * C, TL), lambda b, t: (b, 0, t)),                    # [res ; skip]
    )
    # NOTE: on v7x, sweeping pipeline_mode=pl.Buffered(3) on the x/cond specs may hide
    # DMA issue latency once VMEM headroom allows it — measure, don't assume.

    cost = pl.CostEstimate(
        flops=2 * B * L_pad * (2 * C) * (3 * C + Dp + C),
        transcendentals=2 * B * L_pad * (2 * C),
        bytes_accessed=(x_p.size * 4 + cond_full.size * 2
                        + B * (2 * C) * L_pad * 4 + emb.size * 4),
    )

    out = pl.pallas_call(
        kernel,
        out_shape=jax.ShapeDtypeStruct((B, 2 * C, L_pad), x.dtype),
        grid_spec=grid_spec,
        compiler_params=pltpu.CompilerParams(
            dimension_semantics=("parallel", "parallel"),
            vmem_limit_bytes=vmem_limit,
        ),
        cost_estimate=cost,
    )(x_p, x_p, x_p, emb, cond_full, w_taps, w_cond, b_big, w_out, b_out)

    res = out[:, :C, :L]
    skip = out[:, C:, :L]
    return res, skip


def reference_forward(x, diffusion_step_embedding, condition_embedding, params,
                      kernel_size, dilation):
    """Pure-JAX f32 reference mirroring the PyTorch module exactly."""
    B, C, L = x.shape
    Lc = condition_embedding.shape[2]
    y = x + diffusion_step_embedding[..., None]
    after_dil = jax.lax.conv_general_dilated(
        y, params["w_dil"], window_strides=(1,), padding=[(dilation, dilation)],
        rhs_dilation=(dilation,), dimension_numbers=("NCH", "OIH", "NCH"),
    ) + params["b_dil"][None, :, None]
    cond_proj = jnp.einsum("od,bdl->bol", params["w_cond"], condition_embedding) \
        + params["b_cond"][None, :, None]
    nr, rem = L // Lc, L % Lc
    parts = []
    if nr > 0:
        parts.append(jnp.tile(cond_proj, (1, 1, nr)))
    if rem > 0:
        parts.append(cond_proj[..., :rem])
    cond_tiled = parts[0] if len(parts) == 1 else jnp.concatenate(parts, axis=-1)
    cr = after_dil + cond_tiled
    gate, filt = cr[:, :C], cr[:, C:]
    ag = jax.nn.sigmoid(gate) * jnp.tanh(filt)
    outp = jnp.einsum("oc,bcl->bol", params["w_out"], ag) + params["b_out"][None, :, None]
    return (outp[:, :C] + y) / math.sqrt(2.0), outp[:, C:]


def init_params(key, input_condition_dim, channel_size, kernel_size):
    C, D, K = channel_size, input_condition_dim, kernel_size
    k_dil, k_cw, k_cb, k_out = jax.random.split(key, 4)
    # Conv1d weights: kaiming_normal_ (fan_in = C*K); deterministic zero conv biases.
    w_dil = jax.random.normal(k_dil, (2 * C, C, K), jnp.float32) * math.sqrt(2.0 / (C * K))
    b_dil = jnp.zeros((2 * C,), jnp.float32)
    # Linear: default torch init ~ U(-1/sqrt(D), 1/sqrt(D)).
    bound = 1.0 / math.sqrt(D)
    w_cond = jax.random.uniform(k_cw, (2 * C, D), jnp.float32, -bound, bound)
    b_cond = jax.random.uniform(k_cb, (2 * C,), jnp.float32, -bound, bound)
    # 1x1 output conv (kaiming_normal_, fan_in = C).
    w_out = jax.random.normal(k_out, (2 * C, C), jnp.float32) * math.sqrt(2.0 / C)
    b_out = jnp.zeros((2 * C,), jnp.float32)
    return dict(w_dil=w_dil, b_dil=b_dil, w_cond=w_cond, b_cond=b_cond,
                w_out=w_out, b_out=b_out)


if __name__ == "__main__":
    configs = [
        # Single L tile (T == 1): global edge masks only.
        dict(B=2, C=32, D=8, K=3, dil=2, L=20, Lc=8, tile_len=None),
        # Forced 128-wide tiles (T == 3): cross-tile conv halo, padded remainder columns
        # and the num_repeats/remainder condition tiling.
        dict(B=2, C=32, D=8, K=3, dil=4, L=300, Lc=96, tile_len=128),
        # Dilation close to the tile length (halo nearly fills its 128-column block).
        dict(B=1, C=16, D=8, K=3, dil=120, L=280, Lc=280, tile_len=128),
    ]
    root = jax.random.PRNGKey(0)
    for i, cfg in enumerate(configs):
        key = jax.random.fold_in(root, i)
        k_x, k_e, k_c, k_p = jax.random.split(key, 4)
        x = jax.random.normal(k_x, (cfg["B"], cfg["C"], cfg["L"]), jnp.float32)
        demb = jax.random.normal(k_e, (cfg["B"], cfg["C"]), jnp.float32)
        cond = jax.random.normal(k_c, (cfg["B"], cfg["D"], cfg["Lc"]), jnp.float32)
        params = init_params(k_p, cfg["D"], cfg["C"], cfg["K"])

        res, skip = residual_block_forward(x, demb, cond, params,
                                           cfg["K"], cfg["dil"],
                                           tile_len=cfg["tile_len"])
        res, skip = jax.block_until_ready((res, skip))

        res_ref, skip_ref = reference_forward(x, demb, cond, params,
                                              cfg["K"], cfg["dil"])
        # bf16 MXU operands (f32 accumulation) -> deliberately loosened tolerance
        # against the pure-f32 reference.
        assert jnp.allclose(res, res_ref, rtol=5e-2, atol=5e-2), f"residual mismatch (cfg {i})"
        assert jnp.allclose(skip, skip_ref, rtol=5e-2, atol=5e-2), f"skip mismatch (cfg {i})"

    print("KERNEL_OK")
</pallas_src>

<mosaic_0001>
module attributes {stable_mosaic.version = 11 : i64} {
  func.func @kernel(%arg0: i32, %arg1: i32, %arg2: memref<1x32x128xf32, #tpu.memory_space<vmem>>, %arg3: memref<1x32x128xf32, #tpu.memory_space<vmem>>, %arg4: memref<1x32x128xf32, #tpu.memory_space<vmem>>, %arg5: memref<1x32x1xf32, #tpu.memory_space<vmem>>, %arg6: memref<1x16x128xbf16, #tpu.memory_space<vmem>>, %arg7: memref<3x64x32xbf16, #tpu.memory_space<vmem>>, %arg8: memref<64x16xbf16, #tpu.memory_space<vmem>>, %arg9: memref<64x1xf32, #tpu.memory_space<vmem>>, %arg10: memref<64x32xbf16, #tpu.memory_space<vmem>>, %arg11: memref<64x1xf32, #tpu.memory_space<vmem>>, %arg12: memref<1x64x128xf32, #tpu.memory_space<vmem>>) attributes {dimension_semantics = [#tpu.dimension_semantics<parallel>, #tpu.dimension_semantics<parallel>], iteration_bounds = array<i64: 2, 1>, scalar_prefetch = 0 : i64, scratch_operands = 0 : i64, tpu.core_type = #tpu.core_type<tc>, window_params = [{transform_indices = @transform_0, window_bounds = array<i64: 1, 32, 128>}, {transform_indices = @transform_1, window_bounds = array<i64: 1, 32, 128>}, {transform_indices = @transform_2, window_bounds = array<i64: 1, 32, 128>}, {transform_indices = @transform_3, window_bounds = array<i64: 1, 32, 1>}, {transform_indices = @transform_4, window_bounds = array<i64: 1, 16, 128>}, {pipeline_mode = #tpu.pipeline_mode<synchronous>, transform_indices = @transform_5, window_bounds = array<i64: 3, 64, 32>}, {pipeline_mode = #tpu.pipeline_mode<synchronous>, transform_indices = @transform_6, window_bounds = array<i64: 64, 16>}, {pipeline_mode = #tpu.pipeline_mode<synchronous>, transform_indices = @transform_7, window_bounds = array<i64: 64, 1>}, {pipeline_mode = #tpu.pipeline_mode<synchronous>, transform_indices = @transform_8, window_bounds = array<i64: 64, 32>}, {pipeline_mode = #tpu.pipeline_mode<synchronous>, transform_indices = @transform_9, window_bounds = array<i64: 64, 1>}, {transform_indices = @transform_10, window_bounds = array<i64: 1, 64, 128>}]} {
    %c0 = arith.constant 0 : index
    %c0_0 = arith.constant 0 : index
    %c0_1 = arith.constant 0 : index
    %0 = vector.load %arg5[%c0, %c0_0, %c0_1] : memref<1x32x1xf32, #tpu.memory_space<vmem>>, vector<1x32x1xf32>
    %1 = vector.shape_cast %0 : vector<1x32x1xf32> to vector<32x1xf32>
    %c0_2 = arith.constant 0 : index
    %c0_3 = arith.constant 0 : index
    %c0_4 = arith.constant 0 : index
    %2 = vector.load %arg2[%c0_2, %c0_3, %c0_4] : memref<1x32x128xf32, #tpu.memory_space<vmem>>, vector<1x32x128xf32>
    %3 = vector.shape_cast %2 : vector<1x32x128xf32> to vector<32x128xf32>
    %4 = vector.broadcast %1 : vector<32x1xf32> to vector<32x128xf32>
    %5 = arith.addf %3, %4 : vector<32x128xf32>
    %c0_5 = arith.constant 0 : index
    %c0_6 = arith.constant 0 : index
    %c0_7 = arith.constant 0 : index
    %6 = vector.load %arg3[%c0_5, %c0_6, %c0_7] : memref<1x32x128xf32, #tpu.memory_space<vmem>>, vector<1x32x128xf32>
    %7 = vector.shape_cast %6 : vector<1x32x128xf32> to vector<32x128xf32>
    %c0_8 = arith.constant 0 : index
    %c0_9 = arith.constant 0 : index
    %c0_10 = arith.constant 0 : index
    %8 = vector.load %arg4[%c0_8, %c0_9, %c0_10] : memref<1x32x128xf32, #tpu.memory_space<vmem>>, vector<1x32x128xf32>
    %9 = vector.shape_cast %8 : vector<1x32x128xf32> to vector<32x128xf32>
    %c0_i32 = arith.constant 0 : i32
    %10 = arith.cmpi sgt, %arg1, %c0_i32 : i32
    %11 = vector.extract_strided_slice %7 {offsets = [0, 126], sizes = [32, 2], strides = [1, 1]} : vector<32x128xf32> to vector<32x2xf32>
    %12 = vector.broadcast %1 : vector<32x1xf32> to vector<32x2xf32>
    %13 = arith.addf %11, %12 : vector<32x2xf32>
    %cst = arith.constant 0.000000e+00 : f32
    %14 = vector.broadcast %cst : f32 to vector<32x2xf32>
    %15 = arith.select %10, %13, %14 : vector<32x2xf32>
    %16 = vector.extract_strided_slice %9 {offsets = [0, 0], sizes = [32, 2], strides = [1, 1]} : vector<32x128xf32> to vector<32x2xf32>
    %17 = vector.broadcast %1 : vector<32x1xf32> to vector<32x2xf32>
    %18 = arith.addf %16, %17 : vector<32x2xf32>
    %19 = vector.extract_strided_slice %5 {offsets = [0, 0], sizes = [32, 126], strides = [1, 1]} : vector<32x128xf32> to vector<32x126xf32>
    %20 = tpu.concatenate %15, %19 in 1 : vector<32x2xf32>, vector<32x126xf32> -> vector<32x128xf32>
    %21 = vector.extract_strided_slice %5 {offsets = [0, 2], sizes = [32, 126], strides = [1, 1]} : vector<32x128xf32> to vector<32x126xf32>
    %22 = tpu.concatenate %21, %18 in 1 : vector<32x126xf32>, vector<32x2xf32> -> vector<32x128xf32>
    %23 = tpu.iota {dimensions = array<i32: 1>} : vector<1x128xi32>
    %c128_i32 = arith.constant 128 : i32
    %24 = arith.muli %arg1, %c128_i32 : i32
    %c18_i32 = arith.constant 18 : i32
    %25 = arith.subi %c18_i32, %24 : i32
    %26 = vector.broadcast %25 : i32 to vector<1x128xi32>
    %27 = arith.cmpi slt, %23, %26 : vector<1x128xi32>
    %cst_11 = arith.constant 0.000000e+00 : f32
    %28 = vector.shape_cast %27 : vector<1x128xi1> to vector<1x128xi1>
    %29 = vector.broadcast %28 : vector<1x128xi1> to vector<32x128xi1>
    %30 = vector.broadcast %cst_11 : f32 to vector<32x128xf32>
    %31 = arith.select %29, %22, %30 : vector<32x128xi1>, vector<32x128xf32>
    %c0_12 = arith.constant 0 : index
    %c0_13 = arith.constant 0 : index
    %c0_14 = arith.constant 0 : index
    %32 = vector.load %arg7[%c0_12, %c0_13, %c0_14] : memref<3x64x32xbf16, #tpu.memory_space<vmem>>, vector<1x64x32xbf16>
    %33 = vector.shape_cast %32 : vector<1x64x32xbf16> to vector<64x32xbf16>
    %34 = arith.truncf %20 : vector<32x128xf32> to vector<32x128xbf16>
    %cst_15 = arith.constant dense<0.000000e+00> : vector<64x128xf32>
    %35 = tpu.matmul %33, %34, %cst_15 {dimension_numbers = #tpu.dot_dimension_numbers<[1], [0], [0], [1], [0, 0, 1, 1], [], []>} : vector<64x32xbf16>, vector<32x128xbf16>, vector<64x128xf32> -> vector<64x128xf32>
    %c1 = arith.constant 1 : index
    %c0_16 = arith.constant 0 : index
    %c0_17 = arith.constant 0 : index
    %36 = vector.load %arg7[%c1, %c0_16, %c0_17] : memref<3x64x32xbf16, #tpu.memory_space<vmem>>, vector<1x64x32xbf16>
    %37 = vector.shape_cast %36 : vector<1x64x32xbf16> to vector<64x32xbf16>
    %38 = arith.truncf %5 : vector<32x128xf32> to vector<32x128xbf16>
    %cst_18 = arith.constant dense<0.000000e+00> : vector<64x128xf32>
    %39 = tpu.matmul %37, %38, %cst_18 {dimension_numbers = #tpu.dot_dimension_numbers<[1], [0], [0], [1], [0, 0, 1, 1], [], []>} : vector<64x32xbf16>, vector<32x128xbf16>, vector<64x128xf32> -> vector<64x128xf32>
    %40 = arith.addf %35, %39 : vector<64x128xf32>
    %c2 = arith.constant 2 : index
    %c0_19 = arith.constant 0 : index
    %c0_20 = arith.constant 0 : index
    %41 = vector.load %arg7[%c2, %c0_19, %c0_20] : memref<3x64x32xbf16, #tpu.memory_space<vmem>>, vector<1x64x32xbf16>
    %42 = vector.shape_cast %41 : vector<1x64x32xbf16> to vector<64x32xbf16>
    %43 = arith.truncf %31 : vector<32x128xf32> to vector<32x128xbf16>
    %cst_21 = arith.constant dense<0.000000e+00> : vector<64x128xf32>
    %44 = tpu.matmul %42, %43, %cst_21 {dimension_numbers = #tpu.dot_dimension_numbers<[1], [0], [0], [1], [0, 0, 1, 1], [], []>} : vector<64x32xbf16>, vector<32x128xbf16>, vector<64x128xf32> -> vector<64x128xf32>
    %45 = arith.addf %40, %44 : vector<64x128xf32>
    %c0_22 = arith.constant 0 : index
    %c0_23 = arith.constant 0 : index
    %46 = vector.load %arg8[%c0_22, %c0_23] : memref<64x16xbf16, #tpu.memory_space<vmem>>, vector<64x16xbf16>
    %c0_24 = arith.constant 0 : index
    %c0_25 = arith.constant 0 : index
    %c0_26 = arith.constant 0 : index
    %47 = vector.load %arg6[%c0_24, %c0_25, %c0_26] : memref<1x16x128xbf16, #tpu.memory_space<vmem>>, vector<1x16x128xbf16>
    %48 = vector.shape_cast %47 : vector<1x16x128xbf16> to vector<16x128xbf16>
    %cst_27 = arith.constant dense<0.000000e+00> : vector<64x128xf32>
    %49 = tpu.matmul %46, %48, %cst_27 {dimension_numbers = #tpu.dot_dimension_numbers<[1], [0], [0], [1], [0, 0, 1, 1], [], []>} : vector<64x16xbf16>, vector<16x128xbf16>, vector<64x128xf32> -> vector<64x128xf32>
    %50 = arith.addf %45, %49 : vector<64x128xf32>
    %c0_28 = arith.constant 0 : index
    %c0_29 = arith.constant 0 : index
    %51 = vector.load %arg9[%c0_28, %c0_29] : memref<64x1xf32, #tpu.memory_space<vmem>>, vector<64x1xf32>
    %52 = vector.broadcast %51 : vector<64x1xf32> to vector<64x128xf32>
    %53 = arith.addf %50, %52 : vector<64x128xf32>
    %54 = vector.extract_strided_slice %53 {offsets = [0, 0], sizes = [32, 128], strides = [1, 1]} : vector<64x128xf32> to vector<32x128xf32>
    %55 = vector.extract_strided_slice %53 {offsets = [32, 0], sizes = [32, 128], strides = [1, 1]} : vector<64x128xf32> to vector<32x128xf32>
    %56 = arith.negf %54 : vector<32x128xf32>
    %57 = math.exp %56 : vector<32x128xf32>
    %cst_30 = arith.constant 1.000000e+00 : f32
    %58 = vector.broadcast %cst_30 : f32 to vector<32x128xf32>
    %59 = arith.addf %58, %57 : vector<32x128xf32>
    %60 = arith.divf %58, %59 : vector<32x128xf32>
    %61 = math.tanh %55 : vector<32x128xf32>
    %62 = arith.mulf %60, %61 : vector<32x128xf32>
    %63 = arith.truncf %62 : vector<32x128xf32> to vector<32x128xbf16>
    %c0_31 = arith.constant 0 : index
    %c0_32 = arith.constant 0 : index
    %64 = vector.load %arg10[%c0_31, %c0_32] : memref<64x32xbf16, #tpu.memory_space<vmem>>, vector<64x32xbf16>
    %cst_33 = arith.constant dense<0.000000e+00> : vector<64x128xf32>
    %65 = tpu.matmul %64, %63, %cst_33 {dimension_numbers = #tpu.dot_dimension_numbers<[1], [0], [0], [1], [0, 0, 1, 1], [], []>} : vector<64x32xbf16>, vector<32x128xbf16>, vector<64x128xf32> -> vector<64x128xf32>
    %c0_34 = arith.constant 0 : index
    %c0_35 = arith.constant 0 : index
    %66 = vector.load %arg11[%c0_34, %c0_35] : memref<64x1xf32, #tpu.memory_space<vmem>>, vector<64x1xf32>
    %67 = vector.broadcast %66 : vector<64x1xf32> to vector<64x128xf32>
    %68 = arith.addf %65, %67 : vector<64x128xf32>
    %69 = vector.extract_strided_slice %68 {offsets = [0, 0], sizes = [32, 128], strides = [1, 1]} : vector<64x128xf32> to vector<32x128xf32>
    %70 = arith.addf %69, %5 : vector<32x128xf32>
    %cst_36 = arith.constant 0.707106769 : f32
    %71 = vector.broadcast %cst_36 : f32 to vector<32x128xf32>
    %72 = arith.mulf %70, %71 : vector<32x128xf32>
    %c0_37 = arith.constant 0 : index
    %c0_38 = arith.constant 0 : index
    %c0_39 = arith.constant 0 : index
    %73 = vector.load %arg12[%c0_37, %c0_38, %c0_39] : memref<1x64x128xf32, #tpu.memory_space<vmem>>, vector<1x32x128xf32>
    %74 = vector.shape_cast %73 : vector<1x32x128xf32> to vector<32x128xf32>
    %75 = vector.shape_cast %72 : vector<32x128xf32> to vector<1x32x128xf32>
    tpu.vector_store %arg12[%c0_37, %c0_38, %c0_39], %75 {strides = array<i32>} : memref<1x64x128xf32, #tpu.memory_space<vmem>>, vector<1x32x128xf32>,
    %76 = vector.extract_strided_slice %68 {offsets = [32, 0], sizes = [32, 128], strides = [1, 1]} : vector<64x128xf32> to vector<32x128xf32>
    %c0_40 = arith.constant 0 : index
    %c32 = arith.constant 32 : index
    %c0_41 = arith.constant 0 : index
    %77 = vector.load %arg12[%c0_40, %c32, %c0_41] : memref<1x64x128xf32, #tpu.memory_space<vmem>>, vector<1x32x128xf32>
    %78 = vector.shape_cast %77 : vector<1x32x128xf32> to vector<32x128xf32>
    %79 = vector.shape_cast %76 : vector<32x128xf32> to vector<1x32x128xf32>
    tpu.vector_store %arg12[%c0_40, %c32, %c0_41], %79 {strides = array<i32>} : memref<1x64x128xf32, #tpu.memory_space<vmem>>, vector<1x32x128xf32>,
    return
  }
  func.func @transform_0(%arg0: i32, %arg1: i32) -> (i32, i32, i32) {
    %c0_i32 = arith.constant 0 : i32
    %c0_i32_0 = arith.constant 0 : i32
    return %arg0, %c0_i32, %arg1 : i32, i32, i32
  }
  func.func @transform_1(%arg0: i32, %arg1: i32) -> (i32, i32, i32) {
    %c1_i32 = arith.constant 1 : i32
    %0 = arith.muli %arg1, %c1_i32 : i32
    %c1_i32_0 = arith.constant 1 : i32
    %1 = arith.subi %0, %c1_i32_0 : i32
    %c0_i32 = arith.constant 0 : i32
    %2 = arith.maxsi %1, %c0_i32 : i32
    %c0_i32_1 = arith.constant 0 : i32
    %c0_i32_2 = arith.constant 0 : i32
    return %arg0, %c0_i32_1, %2 : i32, i32, i32
  }
  func.func @transform_2(%arg0: i32, %arg1: i32) -> (i32, i32, i32) {
    %c1_i32 = arith.constant 1 : i32
    %0 = arith.addi %arg1, %c1_i32 : i32
    %c1_i32_0 = arith.constant 1 : i32
    %1 = arith.muli %0, %c1_i32_0 : i32
    %c0_i32 = arith.constant 0 : i32
    %2 = arith.minsi %1, %c0_i32 : i32
    %c0_i32_1 = arith.constant 0 : i32
    %c0_i32_2 = arith.constant 0 : i32
    return %arg0, %c0_i32_1, %2 : i32, i32, i32
  }
  func.func @transform_3(%arg0: i32, %arg1: i32) -> (i32, i32, i32) {
    %c0_i32 = arith.constant 0 : i32
    %c0_i32_0 = arith.constant 0 : i32
    %c0_i32_1 = arith.constant 0 : i32
    return %arg0, %c0_i32, %c0_i32_0 : i32, i32, i32
  }
  func.func @transform_4(%arg0: i32, %arg1: i32) -> (i32, i32, i32) {
    %c0_i32 = arith.constant 0 : i32
    %c0_i32_0 = arith.constant 0 : i32
    return %arg0, %c0_i32, %arg1 : i32, i32, i32
  }
  func.func @transform_5(%arg0: i32, %arg1: i32) -> (i32, i32, i32) {
    %c0_i32 = arith.constant 0 : i32
    %c0_i32_0 = arith.constant 0 : i32
    %c0_i32_1 = arith.constant 0 : i32
    %c0_i32_2 = arith.constant 0 : i32
    return %c0_i32, %c0_i32_0, %c0_i32_1 : i32, i32, i32
  }
  func.func @transform_6(%arg0: i32, %arg1: i32) -> (i32, i32) {
    %c0_i32 = arith.constant 0 : i32
    %c0_i32_0 = arith.constant 0 : i32
    %c0_i32_1 = arith.constant 0 : i32
    return %c0_i32, %c0_i32_0 : i32, i32
  }
  func.func @transform_7(%arg0: i32, %arg1: i32) -> (i32, i32) {
    %c0_i32 = arith.constant 0 : i32
    %c0_i32_0 = arith.constant 0 : i32
    %c0_i32_1 = arith.constant 0 : i32
    return %c0_i32, %c0_i32_0 : i32, i32
  }
  func.func @transform_8(%arg0: i32, %arg1: i32) -> (i32, i32) {
    %c0_i32 = arith.constant 0 : i32
    %c0_i32_0 = arith.constant 0 : i32
    %c0_i32_1 = arith.constant 0 : i32
    return %c0_i32, %c0_i32_0 : i32, i32
  }
  func.func @transform_9(%arg0: i32, %arg1: i32) -> (i32, i32) {
    %c0_i32 = arith.constant 0 : i32
    %c0_i32_0 = arith.constant 0 : i32
    %c0_i32_1 = arith.constant 0 : i32
    return %c0_i32, %c0_i32_0 : i32, i32
  }
  func.func @transform_10(%arg0: i32, %arg1: i32) -> (i32, i32, i32) {
    %c0_i32 = arith.constant 0 : i32
    %c0_i32_0 = arith.constant 0 : i32
    return %arg0, %c0_i32, %arg1 : i32, i32, i32
  }
}

</mosaic_0001>

<llo_original>
// kernel: tpu_custom_call.1
$region0: #{tpu_custom_call.1}
  #allocation0 [shape = 'u32[]', space=smem, size = 0x4, offset = 0x4, fixed_abs, tag = 'smem constant byte address 0x4 - core index']
  #allocation1 [shape = 'u32[144,128]{1,0:T(1,128)}', space=vmem, size = 0x12000, scoped, tag = 'internal scratch']
  %s0 = inlined_call_operand.vmem [shape: f32[2,32,128], index: 0, kind: input, shape index: {}]
  %s1 = inlined_call_operand.vmem [shape: f32[2,32,128], index: 1, kind: input, shape index: {}]
  %s2 = inlined_call_operand.vmem [shape: f32[2,32,128], index: 2, kind: input, shape index: {}]
  %s3 = inlined_call_operand.vmem [shape: f32[2,32,1], index: 3, kind: input, shape index: {}]
  %s4 = inlined_call_operand.vmem [shape: bf16[2,16,128], index: 4, kind: input, shape index: {}]
  %s5 = inlined_call_operand.vmem [shape: bf16[3,64,32], index: 5, kind: input, shape index: {}]
  %s6 = inlined_call_operand.vmem [shape: bf16[64,16], index: 6, kind: input, shape index: {}]
  %s7 = inlined_call_operand.vmem [shape: f32[64,1], index: 7, kind: input, shape index: {}]
  %s8 = inlined_call_operand.vmem [shape: bf16[64,32], index: 8, kind: input, shape index: {}]
  %s9 = inlined_call_operand.vmem [shape: f32[64,1], index: 9, kind: input, shape index: {}]
  %s10 = inlined_call_operand.hbm [shape: f32[2,64,128], index: 10, kind: output, shape index: {}]
  %s11 = sld [smem:[#allocation0]]
  $region73: #{tpu_custom_call.1} parent=0
    _
  %s13 = ssub.s32 1, %s11
  %s14 = scalar_select 0, %s13, %s11
  $region1: #{tpu_custom_call.1} parent=0
    #allocation2 [shape = 'u8[65536]{0}', space=vmem, size = 0x10000, scoped, tag = 'output window, operand 0']
    #allocation3 [shape = 's32[2]{0}', space=sflag, size = 0x8, scoped, tag = 'scoped memory for tpu_custom_call.1']
    %15 = vsyncpa [#allocation3], 0
    %s16 = scalar_lea.sflag [#allocation3], 1
    %17 = vsyncpa %s16, 0
    loop: start=0, step=1, limit=4
    $region2: #{tpu_custom_call.1} parent=1 // loop_pre_header
      _
    $region3: #{tpu_custom_call.1} parent=1 // loop_header
      %s19 = sphi 0, %s23
      %p20 = scmp.ge.s32.totalorder %s19, 4
      %s26 = sphi 0, %s38
      %s27 = sphi 0, %s34
      %s28 = sphi 0, %s26
      %s29 = sphi 0, %s27
      %s30 = sphi 0, %s28
      %s31 = sphi 0, %s29
      %s43 = sphi 0, %s45
      %s46 = sphi 0, %s43
      %s47 = sphi 0, %s46
      %s63 = sphi 0, %s47
      %s77 = sphi 0, %s79
      %s80 = sphi 0, %s77
      %s81 = sphi 0, %s80
      %s97 = sphi 0, %s81
      %s111 = sphi 0, %s113
      %s114 = sphi 0, %s111
      %s115 = sphi 0, %s114
      %s131 = sphi 0, %s115
      %s137 = sphi 0, %s139
      %s140 = sphi 0, %s137
      %s141 = sphi 0, %s140
      %s157 = sphi 0, %s141
      %s165 = sphi 0, %s167
      %s168 = sphi 0, %s165
      %s169 = sphi 0, %s168
      %s185 = sphi 0, %s169
      %s189 = sphi 0, %s189
      %s191 = sphi 0, %s189
      %s192 = sphi 0, %s191
      %s206 = sphi 0, %s192
      %s210 = sphi 0, %s210
      %s212 = sphi 0, %s210
      %s213 = sphi 0, %s212
      %s227 = sphi 0, %s213
      %s231 = sphi 0, %s231
      %s233 = sphi 0, %s231
      %s234 = sphi 0, %s233
      %s248 = sphi 0, %s234
      %s252 = sphi 0, %s252
      %s254 = sphi 0, %s252
      %s255 = sphi 0, %s254
      %s269 = sphi 0, %s255
      %s273 = sphi 0, %s273
      %s275 = sphi 0, %s273
      %s276 = sphi 0, %s275
      %s290 = sphi 0, %s276
      %s298 = sphi 0, %s300
      %s301 = sphi 0, %s298
      %s302 = sphi 0, %s301
      %s318 = sphi 0, %s302
    $region4: #{tpu_custom_call.1} parent=1 // loop_header_branch
      %22 = sbr.rel (%p20) target = $region8
    $region5: #{tpu_custom_call.1} parent=1 // loop_body
      %s24 = ssub.s32 %s19, 1
      %s25 = ssub.s32 %s19, 2
      %s32 = sadd.s32 1, %s27
      %p33 = scmp.ge.s32.totalorder %s32, 1
      %s34 = scalar_select %p33, 0, %s32
      %s35 = sadd.s32 1, %s26
      %s36 = scalar_select %p33, %s35, %s26
      %p37 = scmp.ge.s32.totalorder %s36, 2
      %s38 = scalar_select %p37, 0, %s36
      %s39 = ssub.s32 %s26, %s38
      %s40 = ssub.s32 %s27, %s34
      %s41 = sor.u32 %s39, %s40
      %p42 = scmp.eq.s32.totalorder %s41, 0
      %s44 = sadd.s32 %s43, 1
      %s45 = scalar_select %p42, %s43, %s44
      %p48 = pneg %p42
      %p49 = scmp.eq.s32.totalorder %s19, 1
      %p50 = por %p48, %p49
      %p51 = scmp.ne.s32.totalorder %s43, %s46
      %p52 = scmp.eq.s32.totalorder %s19, 0
      %p53 = por %p51, %p52
      %p54 = scmp.ne.s32.totalorder %s43, %s46
      %p55 = scmp.eq.s32.totalorder %s24, 1
      %p56 = por %p54, %p55
      %p57 = scmp.ne.s32.totalorder %s46, %s47
      %p58 = scmp.eq.s32.totalorder %s24, 0
      %p59 = por %p57, %p58
      %p60 = scmp.ne.s32.totalorder %s46, %s47
      %p61 = scmp.eq.s32.totalorder %s25, 1
      %p62 = por %p60, %p61
      %p64 = scmp.ne.s32.totalorder %s47, %s63
      %p65 = scmp.eq.s32.totalorder %s25, 0
      %p66 = por %p64, %p65
      %s67 = ssub.s32 %s27, 1
      %p68 = scmp.gt.s32.totalorder %s67, 0
      %s69 = scalar_select %p68, %s67, 0
      %s70 = ssub.s32 %s34, 1
      %p71 = scmp.gt.s32.totalorder %s70, 0
      %s72 = scalar_select %p71, %s70, 0
      %s73 = ssub.s32 %s26, %s38
      %s74 = ssub.s32 %s69, %s72
      %s75 = sor.u32 %s73, %s74
      %p76 = scmp.eq.s32.totalorder %s75, 0
      %s78 = sadd.s32 %s77, 1
      %s79 = scalar_select %p76, %s77, %s78
      %p82 = pneg %p76
      %p83 = scmp.eq.s32.totalorder %s19, 1
      %p84 = por %p82, %p83
      %p85 = scmp.ne.s32.totalorder %s77, %s80
      %p86 = scmp.eq.s32.totalorder %s19, 0
      %p87 = por %p85, %p86
      %p88 = scmp.ne.s32.totalorder %s77, %s80
      %p89 = scmp.eq.s32.totalorder %s24, 1
      %p90 = por %p88, %p89
      %p91 = scmp.ne.s32.totalorder %s80, %s81
      %p92 = scmp.eq.s32.totalorder %s24, 0
      %p93 = por %p91, %p92
      %p94 = scmp.ne.s32.totalorder %s80, %s81
      %p95 = scmp.eq.s32.totalorder %s25, 1
      %p96 = por %p94, %p95
      %p98 = scmp.ne.s32.totalorder %s81, %s97
      %p99 = scmp.eq.s32.totalorder %s25, 0
      %p100 = por %p98, %p99
      %s101 = sadd.s32 %s27, 1
      %p102 = scmp.lt.s32.totalorder %s101, 0
      %s103 = scalar_select %p102, %s101, 0
      %s104 = sadd.s32 %s34, 1
      %p105 = scmp.lt.s32.totalorder %s104, 0
      %s106 = scalar_select %p105, %s104, 0
      %s107 = ssub.s32 %s26, %s38
      %s108 = ssub.s32 %s103, %s106
      %s109 = sor.u32 %s107, %s108
      %p110 = scmp.eq.s32.totalorder %s109, 0
      %s112 = sadd.s32 %s111, 1
      %s113 = scalar_select %p110, %s111, %s112
      %p116 = pneg %p110
      %p117 = scmp.eq.s32.totalorder %s19, 1
      %p118 = por %p116, %p117
      %p119 = scmp.ne.s32.totalorder %s111, %s114
      %p120 = scmp.eq.s32.totalorder %s19, 0
      %p121 = por %p119, %p120
      %p122 = scmp.ne.s32.totalorder %s111, %s114
      %p123 = scmp.eq.s32.totalorder %s24, 1
      %p124 = por %p122, %p123
      %p125 = scmp.ne.s32.totalorder %s114, %s115
      %p126 = scmp.eq.s32.totalorder %s24, 0
      %p127 = por %p125, %p126
      %p128 = scmp.ne.s32.totalorder %s114, %s115
      %p129 = scmp.eq.s32.totalorder %s25, 1
      %p130 = por %p128, %p129
      %p132 = scmp.ne.s32.totalorder %s115, %s131
      %p133 = scmp.eq.s32.totalorder %s25, 0
      %p134 = por %p132, %p133
      %s135 = ssub.s32 %s26, %s38
      %p136 = scmp.eq.s32.totalorder %s135, 0
      %s138 = sadd.s32 %s137, 1
      %s139 = scalar_select %p136, %s137, %s138
      %p142 = pneg %p136
      %p143 = scmp.eq.s32.totalorder %s19, 1
      %p144 = por %p142, %p143
      %p145 = scmp.ne.s32.totalorder %s137, %s140
      %p146 = scmp.eq.s32.totalorder %s19, 0
      %p147 = por %p145, %p146
      %p148 = scmp.ne.s32.totalorder %s137, %s140
      %p149 = scmp.eq.s32.totalorder %s24, 1
      %p150 = por %p148, %p149
      %p151 = scmp.ne.s32.totalorder %s140, %s141
      %p152 = scmp.eq.s32.totalorder %s24, 0
      %p153 = por %p151, %p152
      %p154 = scmp.ne.s32.totalorder %s140, %s141
      %p155 = scmp.eq.s32.totalorder %s25, 1
      %p156 = por %p154, %p155
      %p158 = scmp.ne.s32.totalorder %s141, %s157
      %p159 = scmp.eq.s32.totalorder %s25, 0
      %p160 = por %p158, %p159
      %s161 = ssub.s32 %s26, %s38
      %s162 = ssub.s32 %s27, %s34
      %s163 = sor.u32 %s161, %s162
      %p164 = scmp.eq.s32.totalorder %s163, 0
      %s166 = sadd.s32 %s165, 1
      %s167 = scalar_select %p164, %s165, %s166
      %p170 = pneg %p164
      %p171 = scmp.eq.s32.totalorder %s19, 1
      %p172 = por %p170, %p171
      %p173 = scmp.ne.s32.totalorder %s165, %s168
      %p174 = scmp.eq.s32.totalorder %s19, 0
      %p175 = por %p173, %p174
      %p176 = scmp.ne.s32.totalorder %s165, %s168
      %p177 = scmp.eq.s32.totalorder %s24, 1
      %p178 = por %p176, %p177
      %p179 = scmp.ne.s32.totalorder %s168, %s169
      %p180 = scmp.eq.s32.totalorder %s24, 0
      %p181 = por %p179, %p180
      %p182 = scmp.ne.s32.totalorder %s168, %s169
      %p183 = scmp.eq.s32.totalorder %s25, 1
      %p184 = por %p182, %p183
      %p186 = scmp.ne.s32.totalorder %s169, %s185
      %p187 = scmp.eq.s32.totalorder %s25, 0
      %p188 = por %p186, %p187
      %s190 = sadd.s32 %s189, 1
      %p193 = scmp.eq.s32.totalorder %s19, 1
      %p194 = scmp.ne.s32.totalorder %s189, %s191
      %p195 = scmp.eq.s32.totalorder %s19, 0
      %p196 = por %p194, %p195
      %p197 = scmp.ne.s32.totalorder %s189, %s191
      %p198 = scmp.eq.s32.totalorder %s24, 1
      %p199 = por %p197, %p198
      %p200 = scmp.ne.s32.totalorder %s191, %s192
      %p201 = scmp.eq.s32.totalorder %s24, 0
      %p202 = por %p200, %p201
      %p203 = scmp.ne.s32.totalorder %s191, %s192
      %p204 = scmp.eq.s32.totalorder %s25, 1
      %p205 = por %p203, %p204
      %p207 = scmp.ne.s32.totalorder %s192, %s206
      %p208 = scmp.eq.s32.totalorder %s25, 0
      %p209 = por %p207, %p208
      %s211 = sadd.s32 %s210, 1
      %p214 = scmp.eq.s32.totalorder %s19, 1
      %p215 = scmp.ne.s32.totalorder %s210, %s212
      %p216 = scmp.eq.s32.totalorder %s19, 0
      %p217 = por %p215, %p216
      %p218 = scmp.ne.s32.totalorder %s210, %s212
      %p219 = scmp.eq.s32.totalorder %s24, 1
      %p220 = por %p218, %p219
      %p221 = scmp.ne.s32.totalorder %s212, %s213
      %p222 = scmp.eq.s32.totalorder %s24, 0
      %p223 = por %p221, %p222
      %p224 = scmp.ne.s32.totalorder %s212, %s213
      %p225 = scmp.eq.s32.totalorder %s25, 1
      %p226 = por %p224, %p225
      %p228 = scmp.ne.s32.totalorder %s213, %s227
      %p229 = scmp.eq.s32.totalorder %s25, 0
      %p230 = por %p228, %p229
      %s232 = sadd.s32 %s231, 1
      %p235 = scmp.eq.s32.totalorder %s19, 1
      %p236 = scmp.ne.s32.totalorder %s231, %s233
      %p237 = scmp.eq.s32.totalorder %s19, 0
      %p238 = por %p236, %p237
      %p239 = scmp.ne.s32.totalorder %s231, %s233
      %p240 = scmp.eq.s32.totalorder %s24, 1
      %p241 = por %p239, %p240
      %p242 = scmp.ne.s32.totalorder %s233, %s234
      %p243 = scmp.eq.s32.totalorder %s24, 0
      %p244 = por %p242, %p243
      %p245 = scmp.ne.s32.totalorder %s233, %s234
      %p246 = scmp.eq.s32.totalorder %s25, 1
      %p247 = por %p245, %p246
      %p249 = scmp.ne.s32.totalorder %s234, %s248
      %p250 = scmp.eq.s32.totalorder %s25, 0
      %p251 = por %p249, %p250
      %s253 = sadd.s32 %s252, 1
      %p256 = scmp.eq.s32.totalorder %s19, 1
      %p257 = scmp.ne.s32.totalorder %s252, %s254
      %p258 = scmp.eq.s32.totalorder %s19, 0
      %p259 = por %p257, %p258
      %p260 = scmp.ne.s32.totalorder %s252, %s254
      %p261 = scmp.eq.s32.totalorder %s24, 1
      %p262 = por %p260, %p261
      %p263 = scmp.ne.s32.totalorder %s254, %s255
      %p264 = scmp.eq.s32.totalorder %s24, 0
      %p265 = por %p263, %p264
      %p266 = scmp.ne.s32.totalorder %s254, %s255
      %p267 = scmp.eq.s32.totalorder %s25, 1
      %p268 = por %p266, %p267
      %p270 = scmp.ne.s32.totalorder %s255, %s269
      %p271 = scmp.eq.s32.totalorder %s25, 0
      %p272 = por %p270, %p271
      %s274 = sadd.s32 %s273, 1
      %p277 = scmp.eq.s32.totalorder %s19, 1
      %p278 = scmp.ne.s32.totalorder %s273, %s275
      %p279 = scmp.eq.s32.totalorder %s19, 0
      %p280 = por %p278, %p279
      %p281 = scmp.ne.s32.totalorder %s273, %s275
      %p282 = scmp.eq.s32.totalorder %s24, 1
      %p283 = por %p281, %p282
      %p284 = scmp.ne.s32.totalorder %s275, %s276
      %p285 = scmp.eq.s32.totalorder %s24, 0
      %p286 = por %p284, %p285
      %p287 = scmp.ne.s32.totalorder %s275, %s276
      %p288 = scmp.eq.s32.totalorder %s25, 1
      %p289 = por %p287, %p288
      %p291 = scmp.ne.s32.totalorder %s276, %s290
      %p292 = scmp.eq.s32.totalorder %s25, 0
      %p293 = por %p291, %p292
      %s294 = ssub.s32 %s26, %s38
      %s295 = ssub.s32 %s27, %s34
      %s296 = sor.u32 %s294, %s295
      %p297 = scmp.eq.s32.totalorder %s296, 0
      %s299 = sadd.s32 %s298, 1
      %s300 = scalar_select %p297, %s298, %s299
      %p303 = pneg %p297
      %p304 = scmp.eq.s32.totalorder %s19, 1
      %p305 = por %p303, %p304
      %p306 = scmp.ne.s32.totalorder %s298, %s301
      %p307 = scmp.eq.s32.totalorder %s19, 0
      %p308 = por %p306, %p307
      %p309 = scmp.ne.s32.totalorder %s298, %s301
      %p310 = scmp.eq.s32.totalorder %s24, 1
      %p311 = por %p309, %p310
      %p312 = scmp.ne.s32.totalorder %s301, %s302
      %p313 = scmp.eq.s32.totalorder %s24, 0
      %p314 = por %p312, %p313
      %p315 = scmp.ne.s32.totalorder %s301, %s302
      %p316 = scmp.eq.s32.totalorder %s25, 1
      %p317 = por %p315, %p316
      %p319 = scmp.ne.s32.totalorder %s302, %s318
      %p320 = scmp.eq.s32.totalorder %s25, 0
      %p321 = por %p319, %p320
      %p322 = scmp.le.s32.totalorder 1, %s19
      %p323 = scmp.lt.s32.totalorder %s19, 3
      %p324 = pnand %p322, %p323
      %p325 = pneg %p324
      // Predicated region
      $region9: #{tpu_custom_call.1} parent=5 // pred_check
        _
      $region10: #{tpu_custom_call.1} parent=5 // pred_check_branch
        %327 = sbr.rel (%p324) target = $region12
      $region11: #{tpu_custom_call.1} parent=5 // pred_region
        %s328 = ssub.s32 %s19, 1
        // Predicated region
        $region13: #{tpu_custom_call.1} parent=11 // pred_check
          %p329 = pneg %p202
        $region14: #{tpu_custom_call.1} parent=11 // pred_check_branch
          %331 = sbr.rel (%p329) target = $region16
        $region15: #{tpu_custom_call.1} parent=11 // pred_region
          _
        $region16: #{tpu_custom_call.1} parent=11 // pred_fallthru
          _
        // Predicated region
        $region17: #{tpu_custom_call.1} parent=11 // pred_check
          %p332 = pneg %p223
        $region18: #{tpu_custom_call.1} parent=11 // pred_check_branch
          %334 = sbr.rel (%p332) target = $region20
        $region19: #{tpu_custom_call.1} parent=11 // pred_region
          _
        $region20: #{tpu_custom_call.1} parent=11 // pred_fallthru
          _
        // Predicated region
        $region21: #{tpu_custom_call.1} parent=11 // pred_check
          %p335 = pneg %p244
        $region22: #{tpu_custom_call.1} parent=11 // pred_check_branch
          %337 = sbr.rel (%p335) target = $region24
        $region23: #{tpu_custom_call.1} parent=11 // pred_region
          _
        $region24: #{tpu_custom_call.1} parent=11 // pred_fallthru
          _
        // Predicated region
        $region25: #{tpu_custom_call.1} parent=11 // pred_check
          %p338 = pneg %p265
        $region26: #{tpu_custom_call.1} parent=11 // pred_check_branch
          %340 = sbr.rel (%p338) target = $region28
        $region27: #{tpu_custom_call.1} parent=11 // pred_region
          _
        $region28: #{tpu_custom_call.1} parent=11 // pred_fallthru
          _
        // Predicated region
        $region29: #{tpu_custom_call.1} parent=11 // pred_check
          %p341 = pneg %p286
        $region30: #{tpu_custom_call.1} parent=11 // pred_check_branch
          %343 = sbr.rel (%p341) target = $region32
        $region31: #{tpu_custom_call.1} parent=11 // pred_region
          _
        $region32: #{tpu_custom_call.1} parent=11 // pred_fallthru
          _
      $region12: #{tpu_custom_call.1} parent=5 // pred_fallthru
        _
      %p344 = scmp.lt.s32.totalorder %s19, 2
      // Predicated region
      $region33: #{tpu_custom_call.1} parent=5 // pred_check
        %p345 = pneg %p344
      $region34: #{tpu_custom_call.1} parent=5 // pred_check_branch
        %347 = sbr.rel (%p345) target = $region36
      $region35: #{tpu_custom_call.1} parent=5 // pred_region
        // Predicated region
        $region37: #{tpu_custom_call.1} parent=35 // pred_check
          %p348 = pneg %p53
        $region38: #{tpu_custom_call.1} parent=35 // pred_check_branch
          %350 = sbr.rel (%p348) target = $region40
        $region39: #{tpu_custom_call.1} parent=35 // pred_region
          %p351 = scmp.lt.s32.totalorder %s26, 1
          %s352 = scalar_select %p351, %s26, 1
          %p353 = scmp.lt.s32.totalorder %s27, 0
          %s354 = scalar_select %p353, %s27, 0
          %s355 = smul.addr %s352, 4
          %s356 = sadd.s32 %s354, %s355
          %s357 = smul.addr %s356, 8
          %s358 = scalar_lea.vmem %s0, %s357
        $region40: #{tpu_custom_call.1} parent=35 // pred_fallthru
          _
        // Predicated region
        $region41: #{tpu_custom_call.1} parent=35 // pred_check
          %p359 = pneg %p87
        $region42: #{tpu_custom_call.1} parent=35 // pred_check_branch
          %361 = sbr.rel (%p359) target = $region44
        $region43: #{tpu_custom_call.1} parent=35 // pred_region
          %s362 = ssub.s32 %s27, 1
          %p363 = scmp.gt.s32.totalorder %s362, 0
          %s364 = scalar_select %p363, %s362, 0
          %p365 = scmp.lt.s32.totalorder %s26, 1
          %s366 = scalar_select %p365, %s26, 1
          %p367 = scmp.lt.s32.totalorder %s364, 0
          %s368 = scalar_select %p367, %s364, 0
          %s369 = smul.addr %s366, 4
          %s370 = sadd.s32 %s368, %s369
          %s371 = smul.addr %s370, 8
          %s372 = scalar_lea.vmem %s1, %s371
          %s373 = ssub.s32 %s27, 1
          %p374 = scmp.gt.s32.totalorder %s373, 0
          %s375 = scalar_select %p374, %s373, 0
        $region44: #{tpu_custom_call.1} parent=35 // pred_fallthru
          _
        // Predicated region
        $region45: #{tpu_custom_call.1} parent=35 // pred_check
          %p376 = pneg %p121
        $region46: #{tpu_custom_call.1} parent=35 // pred_check_branch
          %378 = sbr.rel (%p376) target = $region48
        $region47: #{tpu_custom_call.1} parent=35 // pred_region
          %s379 = sadd.s32 %s27, 1
          %p380 = scmp.lt.s32.totalorder %s379, 0
          %s381 = scalar_select %p380, %s379, 0
          %p382 = scmp.lt.s32.totalorder %s26, 1
          %s383 = scalar_select %p382, %s26, 1
          %p384 = scmp.lt.s32.totalorder %s381, 0
          %s385 = scalar_select %p384, %s381, 0
          %s386 = smul.addr %s383, 4
          %s387 = sadd.s32 %s385, %s386
          %s388 = smul.addr %s387, 8
          %s389 = scalar_lea.vmem %s2, %s388
          %s390 = sadd.s32 %s27, 1
          %p391 = scmp.lt.s32.totalorder %s390, 0
          %s392 = scalar_select %p391, %s390, 0
        $region48: #{tpu_custom_call.1} parent=35 // pred_fallthru
          _
        // Predicated region
        $region49: #{tpu_custom_call.1} parent=35 // pred_check
          %p393 = pneg %p147
        $region50: #{tpu_custom_call.1} parent=35 // pred_check_branch
          %395 = sbr.rel (%p393) target = $region52
        $region51: #{tpu_custom_call.1} parent=35 // pred_region
          %p396 = scmp.lt.s32.totalorder %s26, 1
          %s397 = scalar_select %p396, %s26, 1
          %s398 = smul.addr %s397, 4
          %s399 = smul.addr %s398, 8
          %s400 = scalar_lea.vmem %s3, %s399
        $region52: #{tpu_custom_call.1} parent=35 // pred_fallthru
          _
        // Predicated region
        $region53: #{tpu_custom_call.1} parent=35 // pred_check
          %p401 = pneg %p175
        $region54: #{tpu_custom_call.1} parent=35 // pred_check_branch
          %403 = sbr.rel (%p401) target = $region56
        $region55: #{tpu_custom_call.1} parent=35 // pred_region
          %p404 = scmp.lt.s32.totalorder %s26, 1
          %s405 = scalar_select %p404, %s26, 1
          %p406 = scmp.lt.s32.totalorder %s27, 0
          %s407 = scalar_select %p406, %s27, 0
          %s408 = smul.addr %s405, 2
          %s409 = sadd.s32 %s407, %s408
          %s410 = smul.addr %s409, 4
          %s411 = scalar_lea.vmem %s4, %s410
        $region56: #{tpu_custom_call.1} parent=35 // pred_fallthru
          _
      $region36: #{tpu_custom_call.1} parent=5 // pred_fallthru
        _
      %p412 = scmp.le.s32.totalorder 1, %s19
      %p413 = scmp.lt.s32.totalorder %s19, 3
      %p414 = pnand %p412, %p413
      %p415 = pneg %p414
      // Predicated region
      $region57: #{tpu_custom_call.1} parent=5 // pred_check
        _
      $region58: #{tpu_custom_call.1} parent=5 // pred_check_branch
        %417 = sbr.rel (%p414) target = $region60
      $region59: #{tpu_custom_call.1} parent=5 // pred_region
        %s418 = ssub.s32 %s19, 1
        %p419 = scmp.lt.s32.totalorder %s28, 1
        %s420 = scalar_select %p419, %s28, 1
        %p421 = scmp.lt.s32.totalorder %s29, 0
        %s422 = scalar_select %p421, %s29, 0
        %s423 = smul.addr %s420, 4
        %s424 = sadd.s32 %s422, %s423
        %s425 = smul.addr %s424, 8
        %s426 = scalar_lea.vmem %s0, %s425
        %p427 = pneg %p59
        %p428 = pneg %p56
        %s429 = ssub.s32 %s29, 1
        %p430 = scmp.gt.s32.totalorder %s429, 0
        %s431 = scalar_select %p430, %s429, 0
        %p432 = scmp.lt.s32.totalorder %s28, 1
        %s433 = scalar_select %p432, %s28, 1
        %p434 = scmp.lt.s32.totalorder %s431, 0
        %s435 = scalar_select %p434, %s431, 0
        %s436 = smul.addr %s433, 4
        %s437 = sadd.s32 %s435, %s436
        %s438 = smul.addr %s437, 8
        %s439 = scalar_lea.vmem %s1, %s438
        %p440 = pneg %p93
        %p441 = pneg %p90
        %s442 = sadd.s32 %s29, 1
        %p443 = scmp.lt.s32.totalorder %s442, 0
        %s444 = scalar_select %p443, %s442, 0
        %p445 = scmp.lt.s32.totalorder %s28, 1
        %s446 = scalar_select %p445, %s28, 1
        %p447 = scmp.lt.s32.totalorder %s444, 0
        %s448 = scalar_select %p447, %s444, 0
        %s449 = smul.addr %s446, 4
        %s450 = sadd.s32 %s448, %s449
        %s451 = smul.addr %s450, 8
        %s452 = scalar_lea.vmem %s2, %s451
        %p453 = pneg %p127
        %p454 = pneg %p124
        %p455 = scmp.lt.s32.totalorder %s28, 1
        %s456 = scalar_select %p455, %s28, 1
        %s457 = smul.addr %s456, 4
        %s458 = smul.addr %s457, 8
        %s459 = scalar_lea.vmem %s3, %s458
        %p460 = pneg %p153
        %p461 = pneg %p150
        %p462 = scmp.lt.s32.totalorder %s28, 1
        %s463 = scalar_select %p462, %s28, 1
        %p464 = scmp.lt.s32.totalorder %s29, 0
        %s465 = scalar_select %p464, %s29, 0
        %s466 = smul.addr %s463, 2
        %s467 = sadd.s32 %s465, %s466
        %s468 = smul.addr %s467, 4
        %s469 = scalar_lea.vmem %s4, %s468
        %p470 = pneg %p181
        %p471 = pneg %p178
        %p472 = pneg %p202
        %p473 = pneg %p199
        %p474 = pneg %p223
        %p475 = pneg %p220
        %p476 = pneg %p244
        %p477 = pneg %p241
        %p478 = pneg %p265
        %p479 = pneg %p262
        %p480 = pneg %p286
        %p481 = pneg %p283
        %p482 = pneg %p314
        %p483 = pneg %p311
        %s484 = sand.u32 %s301, 1
        %s485 = scalar_lea.sflag [#allocation3], %s484
        %s486 = sand.u32 %s301, 1
        %s487 = smul.addr %s486, 64
        %s488 = scalar_lea.vmem [#allocation2], %s487
        %p489 = scmp.lt.s32.totalorder %s28, 1
        %s490 = scalar_select %p489, %s28, 1
        %p491 = scmp.lt.s32.totalorder %s29, 0
        %s492 = scalar_select %p491, %s29, 0
        %s493 = smul.addr %s490, 4
        %s494 = sadd.s32 %s492, %s493
        %s495 = smul.addr %s494, 8
        %s496 = scalar_lea.vmem %s0, %s495
        %s497 = ssub.s32 %s29, 1
        %p498 = scmp.gt.s32.totalorder %s497, 0
        %s499 = scalar_select %p498, %s497, 0
        %p500 = scmp.lt.s32.totalorder %s28, 1
        %s501 = scalar_select %p500, %s28, 1
        %p502 = scmp.lt.s32.totalorder %s499, 0
        %s503 = scalar_select %p502, %s499, 0
        %s504 = smul.addr %s501, 4
        %s505 = sadd.s32 %s503, %s504
        %s506 = smul.addr %s505, 8
        %s507 = scalar_lea.vmem %s1, %s506
        %s508 = ssub.s32 %s29, 1
        %p509 = scmp.gt.s32.totalorder %s508, 0
        %s510 = scalar_select %p509, %s508, 0
        %s511 = sadd.s32 %s29, 1
        %p512 = scmp.lt.s32.totalorder %s511, 0
        %s513 = scalar_select %p512, %s511, 0
        %p514 = scmp.lt.s32.totalorder %s28, 1
        %s515 = scalar_select %p514, %s28, 1
        %p516 = scmp.lt.s32.totalorder %s513, 0
        %s517 = scalar_select %p516, %s513, 0
        %s518 = smul.addr %s515, 4
        %s519 = sadd.s32 %s517, %s518
        %s520 = smul.addr %s519, 8
        %s521 = scalar_lea.vmem %s2, %s520
        %s522 = sadd.s32 %s29, 1
        %p523 = scmp.lt.s32.totalorder %s522, 0
        %s524 = scalar_select %p523, %s522, 0
        %p525 = scmp.lt.s32.totalorder %s28, 1
        %s526 = scalar_select %p525, %s28, 1
        %s527 = smul.addr %s526, 4
        %s528 = smul.addr %s527, 8
        %s529 = scalar_lea.vmem %s3, %s528
        %p530 = scmp.lt.s32.totalorder %s28, 1
        %s531 = scalar_select %p530, %s28, 1
        %p532 = scmp.lt.s32.totalorder %s29, 0
        %s533 = scalar_select %p532, %s29, 0
        %s534 = smul.addr %s531, 2
        %s535 = sadd.s32 %s533, %s534
        %s536 = smul.addr %s535, 4
        %s537 = scalar_lea.vmem %s4, %s536
        %v539 = vld [vmem:[%s529] sm:$0xff]
        %v540 = vld [vmem:[%s529 + $0x8] sm:$0xff]
        %v541 = vld [vmem:[%s529 + $0x10] sm:$0xff]
        %v542 = vld [vmem:[%s529 + $0x18] sm:$0xff]
        %v543 = vld [vmem:[%s496] sm:$0xff]
        %v544 = vld [vmem:[%s496 + $0x8] sm:$0xff]
        %v545 = vld [vmem:[%s496 + $0x10] sm:$0xff]
        %v546 = vld [vmem:[%s496 + $0x18] sm:$0xff]
        %548 = vset.pattern.permute.xlu0 0
        %549 = vperm.xlu0 %548, %v539
        %v550 = vpop.permute.xlu0 %549
        %553 = vset.pattern.permute.xlu0 0
        %554 = vperm.xlu0 %553, %v540
        %v555 = vpop.permute.xlu0 %554
        %558 = vset.pattern.permute.xlu0 0
        %559 = vperm.xlu0 %558, %v541
        %v560 = vpop.permute.xlu0 %559
        %563 = vset.pattern.permute.xlu0 0
        %564 = vperm.xlu0 %563, %v542
        %v565 = vpop.permute.xlu0 %564
        %v567 = vadd.f32 %v543, %v550
        %v568 = vadd.f32 %v544, %v555
        %v569 = vadd.f32 %v545, %v560
        %v570 = vadd.f32 %v546, %v565
        %v571 = vld [vmem:[%s507] sm:$0xff]
        %v572 = vld [vmem:[%s507 + $0x8] sm:$0xff]
        %v573 = vld [vmem:[%s507 + $0x10] sm:$0xff]
        %v574 = vld [vmem:[%s507 + $0x18] sm:$0xff]
        %v575 = vld [vmem:[%s521] sm:$0xff]
        %v576 = vld [vmem:[%s521 + $0x8] sm:$0xff]
        %v577 = vld [vmem:[%s521 + $0x10] sm:$0xff]
        %v578 = vld [vmem:[%s521 + $0x18] sm:$0xff]
        %p579 = scmp.gt.s32.totalorder %s29, 0
        %v580 = vadd.f32 %v571, %v550
        %v581 = vadd.f32 %v572, %v555
        %v582 = vadd.f32 %v573, %v560
        %v583 = vadd.f32 %v574, %v565
        %s584 = scalar_select %p579, 1, 0
        %v585 = vstv %s584
        %vm586 = vcmp.eq.s32.totalorder %v585, 1
        %v587 = vsel %vm586, %v580, 0.0
        %v588 = vsel %vm586, %v581, 0.0
        %v589 = vsel %vm586, %v582, 0.0
        %v590 = vsel %vm586, %v583, 0.0
        %v591 = vadd.f32 %v575, %v550
        %v592 = vadd.f32 %v576, %v555
        %v593 = vadd.f32 %v577, %v560
        %v594 = vadd.f32 %v578, %v565
        %599 = vrot.lane.b32.xlu0 %v587, 2
        %v600 = vpop.permute.xlu0 %599
        %601 = vrot.lane.b32.xlu0 %v588, 2
        %v602 = vpop.permute.xlu0 %601
        %603 = vrot.lane.b32.xlu0 %v589, 2
        %v604 = vpop.permute.xlu0 %603
        %605 = vrot.lane.b32.xlu0 %v590, 2
        %v606 = vpop.permute.xlu0 %605
        %615 = vrot.lane.b32.xlu0 %v567, 2
        %v616 = vpop.permute.xlu0 %615
        %617 = vrot.lane.b32.xlu0 %v568, 2
        %v618 = vpop.permute.xlu0 %617
        %619 = vrot.lane.b32.xlu0 %v569, 2
        %v620 = vpop.permute.xlu0 %619
        %621 = vrot.lane.b32.xlu0 %v570, 2
        %v622 = vpop.permute.xlu0 %621
        %vm627 = vcmask 15360
        %v628 = vsel %vm627, %v600, %v616
        %v629 = vsel %vm627, %v602, %v618
        %v630 = vsel %vm627, %v604, %v620
        %v631 = vsel %vm627, %v606, %v622
        %632 = vrot.lane.b32.xlu0 %v567, 126
        %v633 = vpop.permute.xlu0 %632
        %634 = vrot.lane.b32.xlu0 %v568, 126
        %v635 = vpop.permute.xlu0 %634
        %636 = vrot.lane.b32.xlu0 %v569, 126
        %v637 = vpop.permute.xlu0 %636
        %638 = vrot.lane.b32.xlu0 %v570, 126
        %v639 = vpop.permute.xlu0 %638
        %648 = vrot.lane.b32.xlu0 %v591, 126
        %v649 = vpop.permute.xlu0 %648
        %650 = vrot.lane.b32.xlu0 %v592, 126
        %v651 = vpop.permute.xlu0 %650
        %652 = vrot.lane.b32.xlu0 %v593, 126
        %v653 = vpop.permute.xlu0 %652
        %654 = vrot.lane.b32.xlu0 %v594, 126
        %v655 = vpop.permute.xlu0 %654
        %vm660 = vcmask 1031168
        %v661 = vsel %vm660, %v633, %v649
        %v662 = vsel %vm660, %v635, %v651
        %v663 = vsel %vm660, %v637, %v653
        %v664 = vsel %vm660, %v639, %v655
        %v665 = vlaneseq
        %v666 = vand.u32 %v665, 127
        %s667 = smul.u32 %s29, 128
        %s668 = ssub.s32 18, %s667
        %v669 = vstv %s668
        %vm670 = vcmp.lt.s32.totalorder %v666, %v669
        %v671 = vsel %vm670, 1, 0
        %vm672 = vcmp.eq.s32.totalorder %v671, 1
        %v673 = vsel %vm672, %v661, 0.0
        %v674 = vsel %vm672, %v662, 0.0
        %v675 = vsel %vm672, %v663, 0.0
        %v676 = vsel %vm672, %v664, 0.0
        %v677 = vld [vmem:[%s5] sm:$0xf]
        %v678 = vld [vmem:[%s5 + $0x4] sm:$0xf]
        %v679 = vld [vmem:[%s5 + $0x8] sm:$0xf]
        %v680 = vld [vmem:[%s5 + $0xc] sm:$0xf]
        %v681 = vld [vmem:[%s5 + $0x10] sm:$0xf]
        %v682 = vld [vmem:[%s5 + $0x14] sm:$0xf]
        %v683 = vld [vmem:[%s5 + $0x18] sm:$0xf]
        %v684 = vld [vmem:[%s5 + $0x1c] sm:$0xf]
        %v685 = vpack.c.bf16 %v629, %v628
        %v686 = vpack.c.bf16 %v631, %v630
        %s687 = scalar_lea.vmem %s5, 32
        %v688 = vld [vmem:[%s687] sm:$0xf]
        %v689 = vld [vmem:[%s687 + $0x4] sm:$0xf]
        %v690 = vld [vmem:[%s687 + $0x8] sm:$0xf]
        %v691 = vld [vmem:[%s687 + $0xc] sm:$0xf]
        %v692 = vld [vmem:[%s687 + $0x10] sm:$0xf]
        %v693 = vld [vmem:[%s687 + $0x14] sm:$0xf]
        %v694 = vld [vmem:[%s687 + $0x18] sm:$0xf]
        %v695 = vld [vmem:[%s687 + $0x1c] sm:$0xf]
        %v696 = vpack.c.bf16 %v568, %v567
        %v697 = vpack.c.bf16 %v570, %v569
        %v706 = vunpack.c.l.b16 %v688
        %v707 = vunpack.c.l.b16 %v689
        %v708 = vunpack.c.l.b16 %v690
        %v709 = vunpack.c.l.b16 %v691
        %v710 = vunpack.c.l.b16 %v692
        %v711 = vunpack.c.l.b16 %v693
        %v712 = vunpack.c.l.b16 %v694
        %v713 = vunpack.c.l.b16 %v695
        %v714 = vpack.c.b16 %v707, %v706
        %v715 = vpack.c.b16 %v709, %v708
        %v716 = vpack.c.b16 %v711, %v710
        %v717 = vpack.c.b16 %v713, %v712
        %vm718 = vcmask 261120
        %v720 = vsel %vm718, %v714, 0
        %v723 = vsel %vm718, %v715, 0
        %v726 = vsel %vm718, %v716, 0
        %v729 = vsel %vm718, %v717, 0
        %731 = vmatprep.subr.bf16.mxu0 0
        %732 = vmatpush1.bf16.msra.mxu0 %v696
        %733 = vmatprep.subr.bf16.mxu0 0
        %734 = vmatpush1.bf16.msra.mxu0 %v697
        %735 = vmatprep.subr.bf16.mxu0 0
        %736 = vmatpush1.bf16.msra.mxu0 0
        %737 = vmatprep.subr.bf16.mxu0 0
        %738 = vmatpush1.bf16.msra.mxu0 0
        %739 = vmatprep.subr.bf16.mxu0 0
        %740 = vmatpush1.bf16.msra.mxu0 0
        %741 = vmatprep.subr.bf16.mxu0 0
        %742 = vmatpush1.bf16.msra.mxu0 0
        %743 = vmatprep.subr.bf16.mxu0 0
        %744 = vmatpush1.bf16.msra.mxu0 0
        %745 = vmatprep.subr.bf16.mxu0 0
        %746 = vmatpush1.bf16.msra.mxu0 0
        %747 = vmatprep.subr.bf16.mxu0 0
        %748 = vmatpush1.bf16.msra.mxu0 0
        %749 = vmatprep.subr.bf16.mxu0 0
        %750 = vmatpush1.bf16.msra.mxu0 0
        %751 = vmatprep.subr.bf16.mxu0 0
        %752 = vmatpush1.bf16.msra.mxu0 0
        %753 = vmatprep.subr.bf16.mxu0 0
        %754 = vmatpush1.bf16.msra.mxu0 0
        %755 = vmatprep.subr.bf16.mxu0 0
        %756 = vmatpush1.bf16.msra.mxu0 0
        %757 = vmatprep.subr.bf16.mxu0 0
        %758 = vmatpush1.bf16.msra.mxu0 0
        %759 = vmatprep.subr.bf16.mxu0 0
        %760 = vmatpush1.bf16.msra.mxu0 0
        %761 = vmatprep.subr.bf16.mxu0 0
        %762 = vmatpush1.bf16.msra.mxu0 0
        %763 = vmatprep.mubr.bf16.mxu0 0
        %764 = vmatmul.mubr.bf16.gmra.mrb[0].mxu0 %v720
        %v765 = vpop.f32.mrb[0].mxu0
        %v766 = vadd.f32 0.0, %v765
        %v767 = vpop.f32.mrb[0].mxu0
        %v768 = vpop.f32.mrb[0].mxu0
        %v769 = vadd.f32 0.0, %v768
        %v770 = vpop.f32.mrb[0].mxu0
        %771 = vmatprep.mubr.bf16.mxu0 0
        %772 = vmatmul.mubr.bf16.gmra.mrb[0].mxu0 %v723
        %v773 = vpop.f32.mrb[0].mxu0
        %v774 = vadd.f32 0.0, %v773
        %v775 = vpop.f32.mrb[0].mxu0
        %v776 = vpop.f32.mrb[0].mxu0
        %v777 = vadd.f32 0.0, %v776
        %v778 = vpop.f32.mrb[0].mxu0
        %779 = vmatprep.mubr.bf16.mxu0 0
        %780 = vmatmul.mubr.bf16.gmra.mrb[0].mxu0 %v726
        %v781 = vpop.f32.mrb[0].mxu0
        %v782 = vadd.f32 0.0, %v781
        %v783 = vpop.f32.mrb[0].mxu0
        %v784 = vpop.f32.mrb[0].mxu0
        %v785 = vadd.f32 0.0, %v784
        %v786 = vpop.f32.mrb[0].mxu0
        %787 = vmatprep.mubr.bf16.mxu0 0
        %788 = vmatmul.mubr.bf16.gmra.mrb[0].mxu0 %v729
        %v789 = vpop.f32.mrb[0].mxu0
        %v790 = vadd.f32 0.0, %v789
        %v791 = vpop.f32.mrb[0].mxu0
        %v792 = vpop.f32.mrb[0].mxu0
        %v793 = vadd.f32 0.0, %v792
        %v794 = vpop.f32.mrb[0].mxu0
        %795 = vdwg.mxu0
        %v804 = vunpack.c.l.b16 %v677
        %v805 = vunpack.c.l.b16 %v678
        %v806 = vunpack.c.l.b16 %v679
        %v807 = vunpack.c.l.b16 %v680
        %v808 = vunpack.c.l.b16 %v681
        %v809 = vunpack.c.l.b16 %v682
        %v810 = vunpack.c.l.b16 %v683
        %v811 = vunpack.c.l.b16 %v684
        %v812 = vpack.c.b16 %v805, %v804
        %v813 = vpack.c.b16 %v807, %v806
        %v814 = vpack.c.b16 %v809, %v808
        %v815 = vpack.c.b16 %v811, %v810
        %v817 = vsel %vm718, %v812, 0
        %v820 = vsel %vm718, %v813, 0
        %v823 = vsel %vm718, %v814, 0
        %v826 = vsel %vm718, %v815, 0
        %828 = vmatprep.subr.bf16.mxu0 0
        %829 = vmatpush1.bf16.msra.mxu0 %v685
        %830 = vmatprep.subr.bf16.mxu0 0
        %831 = vmatpush1.bf16.msra.mxu0 %v686
        %832 = vmatprep.subr.bf16.mxu0 0
        %833 = vmatpush1.bf16.msra.mxu0 0
        %834 = vmatprep.subr.bf16.mxu0 0
        %835 = vmatpush1.bf16.msra.mxu0 0
        %836 = vmatprep.subr.bf16.mxu0 0
        %837 = vmatpush1.bf16.msra.mxu0 0
        %838 = vmatprep.subr.bf16.mxu0 0
        %839 = vmatpush1.bf16.msra.mxu0 0
        %840 = vmatprep.subr.bf16.mxu0 0
        %841 = vmatpush1.bf16.msra.mxu0 0
        %842 = vmatprep.subr.bf16.mxu0 0
        %843 = vmatpush1.bf16.msra.mxu0 0
        %844 = vmatprep.subr.bf16.mxu0 0
        %845 = vmatpush1.bf16.msra.mxu0 0
        %846 = vmatprep.subr.bf16.mxu0 0
        %847 = vmatpush1.bf16.msra.mxu0 0
        %848 = vmatprep.subr.bf16.mxu0 0
        %849 = vmatpush1.bf16.msra.mxu0 0
        %850 = vmatprep.subr.bf16.mxu0 0
        %851 = vmatpush1.bf16.msra.mxu0 0
        %852 = vmatprep.subr.bf16.mxu0 0
        %853 = vmatpush1.bf16.msra.mxu0 0
        %854 = vmatprep.subr.bf16.mxu0 0
        %855 = vmatpush1.bf16.msra.mxu0 0
        %856 = vmatprep.subr.bf16.mxu0 0
        %857 = vmatpush1.bf16.msra.mxu0 0
        %858 = vmatprep.subr.bf16.mxu0 0
        %859 = vmatpush1.bf16.msra.mxu0 0
        %860 = vmatprep.mubr.bf16.mxu0 0
        %861 = vmatmul.mubr.bf16.gmra.mrb[0].mxu0 %v817
        %v862 = vpop.f32.mrb[0].mxu0
        %v863 = vadd.f32 %v766, %v862
        %v864 = vpop.f32.mrb[0].mxu0
        %v865 = vpop.f32.mrb[0].mxu0
        %v866 = vadd.f32 %v769, %v865
        %v867 = vpop.f32.mrb[0].mxu0
        %868 = vmatprep.mubr.bf16.mxu0 0
        %869 = vmatmul.mubr.bf16.gmra.mrb[0].mxu0 %v820
        %v870 = vpop.f32.mrb[0].mxu0
        %v871 = vadd.f32 %v774, %v870
        %v872 = vpop.f32.mrb[0].mxu0
        %v873 = vpop.f32.mrb[0].mxu0
        %v874 = vadd.f32 %v777, %v873
        %v875 = vpop.f32.mrb[0].mxu0
        %876 = vmatprep.mubr.bf16.mxu0 0
        %877 = vmatmul.mubr.bf16.gmra.mrb[0].mxu0 %v823
        %v878 = vpop.f32.mrb[0].mxu0
        %v879 = vadd.f32 %v782, %v878
        %v880 = vpop.f32.mrb[0].mxu0
        %v881 = vpop.f32.mrb[0].mxu0
        %v882 = vadd.f32 %v785, %v881
        %v883 = vpop.f32.mrb[0].mxu0
        %884 = vmatprep.mubr.bf16.mxu0 0
        %885 = vmatmul.mubr.bf16.gmra.mrb[0].mxu0 %v826
        %v886 = vpop.f32.mrb[0].mxu0
        %v887 = vadd.f32 %v790, %v886
        %v888 = vpop.f32.mrb[0].mxu0
        %v889 = vpop.f32.mrb[0].mxu0
        %v890 = vadd.f32 %v793, %v889
        %v891 = vpop.f32.mrb[0].mxu0
        %892 = vdwg.mxu0
        %s893 = scalar_lea.vmem %s5, 64
        %v894 = vld [vmem:[%s893] sm:$0xf]
        %v895 = vld [vmem:[%s893 + $0x4] sm:$0xf]
        %v896 = vld [vmem:[%s893 + $0x8] sm:$0xf]
        %v897 = vld [vmem:[%s893 + $0xc] sm:$0xf]
        %v898 = vld [vmem:[%s893 + $0x10] sm:$0xf]
        %v899 = vld [vmem:[%s893 + $0x14] sm:$0xf]
        %v900 = vld [vmem:[%s893 + $0x18] sm:$0xf]
        %v901 = vld [vmem:[%s893 + $0x1c] sm:$0xf]
        %v902 = vpack.c.bf16 %v674, %v673
        %v903 = vpack.c.bf16 %v676, %v675
        %v912 = vunpack.c.l.b16 %v894
        %v913 = vunpack.c.l.b16 %v895
        %v914 = vunpack.c.l.b16 %v896
        %v915 = vunpack.c.l.b16 %v897
        %v916 = vunpack.c.l.b16 %v898
        %v917 = vunpack.c.l.b16 %v899
        %v918 = vunpack.c.l.b16 %v900
        %v919 = vunpack.c.l.b16 %v901
        %v920 = vpack.c.b16 %v913, %v912
        %v921 = vpack.c.b16 %v915, %v914
        %v922 = vpack.c.b16 %v917, %v916
        %v923 = vpack.c.b16 %v919, %v918
        %v925 = vsel %vm718, %v920, 0
        %v928 = vsel %vm718, %v921, 0
        %v931 = vsel %vm718, %v922, 0
        %v934 = vsel %vm718, %v923, 0
        %936 = vmatprep.subr.bf16.mxu0 0
        %937 = vmatpush1.bf16.msra.mxu0 %v902
        %938 = vmatprep.subr.bf16.mxu0 0
        %939 = vmatpush1.bf16.msra.mxu0 %v903
        %940 = vmatprep.subr.bf16.mxu0 0
        %941 = vmatpush1.bf16.msra.mxu0 0
        %942 = vmatprep.subr.bf16.mxu0 0
        %943 = vmatpush1.bf16.msra.mxu0 0
        %944 = vmatprep.subr.bf16.mxu0 0
        %945 = vmatpush1.bf16.msra.mxu0 0
        %946 = vmatprep.subr.bf16.mxu0 0
        %947 = vmatpush1.bf16.msra.mxu0 0
        %948 = vmatprep.subr.bf16.mxu0 0
        %949 = vmatpush1.bf16.msra.mxu0 0
        %950 = vmatprep.subr.bf16.mxu0 0
        %951 = vmatpush1.bf16.msra.mxu0 0
        %952 = vmatprep.subr.bf16.mxu0 0
        %953 = vmatpush1.bf16.msra.mxu0 0
        %954 = vmatprep.subr.bf16.mxu0 0
        %955 = vmatpush1.bf16.msra.mxu0 0
        %956 = vmatprep.subr.bf16.mxu0 0
        %957 = vmatpush1.bf16.msra.mxu0 0
        %958 = vmatprep.subr.bf16.mxu0 0
        %959 = vmatpush1.bf16.msra.mxu0 0
        %960 = vmatprep.subr.bf16.mxu0 0
        %961 = vmatpush1.bf16.msra.mxu0 0
        %962 = vmatprep.subr.bf16.mxu0 0
        %963 = vmatpush1.bf16.msra.mxu0 0
        %964 = vmatprep.subr.bf16.mxu0 0
        %965 = vmatpush1.bf16.msra.mxu0 0
        %966 = vmatprep.subr.bf16.mxu0 0
        %967 = vmatpush1.bf16.msra.mxu0 0
        %968 = vmatprep.mubr.bf16.mxu0 0
        %969 = vmatmul.mubr.bf16.gmra.mrb[0].mxu0 %v925
        %v970 = vpop.f32.mrb[0].mxu0
        %v971 = vadd.f32 0.0, %v970
        %v972 = vpop.f32.mrb[0].mxu0
        %v973 = vpop.f32.mrb[0].mxu0
        %v974 = vadd.f32 0.0, %v973
        %v975 = vpop.f32.mrb[0].mxu0
        %976 = vmatprep.mubr.bf16.mxu0 0
        %977 = vmatmul.mubr.bf16.gmra.mrb[0].mxu0 %v928
        %v978 = vpop.f32.mrb[0].mxu0
        %v979 = vadd.f32 0.0, %v978
        %v980 = vpop.f32.mrb[0].mxu0
        %v981 = vpop.f32.mrb[0].mxu0
        %v982 = vadd.f32 0.0, %v981
        %v983 = vpop.f32.mrb[0].mxu0
        %984 = vmatprep.mubr.bf16.mxu0 0
        %985 = vmatmul.mubr.bf16.gmra.mrb[0].mxu0 %v931
        %v986 = vpop.f32.mrb[0].mxu0
        %v987 = vadd.f32 0.0, %v986
        %v988 = vpop.f32.mrb[0].mxu0
        %v989 = vpop.f32.mrb[0].mxu0
        %v990 = vadd.f32 0.0, %v989
        %v991 = vpop.f32.mrb[0].mxu0
        %992 = vmatprep.mubr.bf16.mxu0 0
        %993 = vmatmul.mubr.bf16.gmra.mrb[0].mxu0 %v934
        %v994 = vpop.f32.mrb[0].mxu0
        %v995 = vadd.f32 0.0, %v994
        %v996 = vpop.f32.mrb[0].mxu0
        %v997 = vpop.f32.mrb[0].mxu0
        %v998 = vadd.f32 0.0, %v997
        %v999 = vpop.f32.mrb[0].mxu0
        %1000 = vdwg.mxu0
        %v1001 = vadd.f32 %v863, %v971
        %v1002 = vadd.f32 %v866, %v974
        %v1003 = vadd.f32 %v871, %v979
        %v1004 = vadd.f32 %v874, %v982
        %v1005 = vadd.f32 %v879, %v987
        %v1006 = vadd.f32 %v882, %v990
        %v1007 = vadd.f32 %v887, %v995
        %v1008 = vadd.f32 %v890, %v998
        %v1009 = vld [vmem:[%s6] sm:$0xf]
        %v1010 = vld [vmem:[%s6 + $0x4] sm:$0xf]
        %v1011 = vld [vmem:[%s6 + $0x8] sm:$0xf]
        %v1012 = vld [vmem:[%s6 + $0xc] sm:$0xf]
        %v1013 = vld [vmem:[%s6 + $0x10] sm:$0xf]
        %v1014 = vld [vmem:[%s6 + $0x14] sm:$0xf]
        %v1015 = vld [vmem:[%s6 + $0x18] sm:$0xf]
        %v1016 = vld [vmem:[%s6 + $0x1c] sm:$0xf]
        %v1017 = vld [vmem:[%s537] sm:$0xf]
        %v1018 = vld [vmem:[%s537 + $0x4] sm:$0xf]
        %v1027 = vunpack.c.l.b16 %v1009
        %v1028 = vunpack.c.l.b16 %v1010
        %v1029 = vunpack.c.l.b16 %v1011
        %v1030 = vunpack.c.l.b16 %v1012
        %v1031 = vunpack.c.l.b16 %v1013
        %v1032 = vunpack.c.l.b16 %v1014
        %v1033 = vunpack.c.l.b16 %v1015
        %v1034 = vunpack.c.l.b16 %v1016
        %v1035 = vpack.c.b16 %v1028, %v1027
        %v1036 = vpack.c.b16 %v1030, %v1029
        %v1037 = vpack.c.b16 %v1032, %v1031
        %v1038 = vpack.c.b16 %v1034, %v1033
        %v1041 = vunpack.c.l.b16 %v1017
        %v1042 = vunpack.c.l.b16 %v1018
        %v1043 = vpack.c.b16 %v1042, %v1041
        %vm1045 = vcmask 130048
        %v1047 = vsel %vm1045, %v1035, 0
        %v1050 = vsel %vm1045, %v1036, 0
        %v1053 = vsel %vm1045, %v1037, 0
        %v1056 = vsel %vm1045, %v1038, 0
        %1058 = vmatprep.subr.bf16.mxu0 0
        %1059 = vmatpush1.bf16.msra.mxu0 %v1043
        %1060 = vmatprep.subr.bf16.mxu0 0
        %1061 = vmatpush1.bf16.msra.mxu0 0
        %1062 = vmatprep.subr.bf16.mxu0 0
        %1063 = vmatpush1.bf16.msra.mxu0 0
        %1064 = vmatprep.subr.bf16.mxu0 0
        %1065 = vmatpush1.bf16.msra.mxu0 0
        %1066 = vmatprep.subr.bf16.mxu0 0
        %1067 = vmatpush1.bf16.msra.mxu0 0
        %1068 = vmatprep.subr.bf16.mxu0 0
        %1069 = vmatpush1.bf16.msra.mxu0 0
        %1070 = vmatprep.subr.bf16.mxu0 0
        %1071 = vmatpush1.bf16.msra.mxu0 0
        %1072 = vmatprep.subr.bf16.mxu0 0
        %1073 = vmatpush1.bf16.msra.mxu0 0
        %1074 = vmatprep.subr.bf16.mxu0 0
        %1075 = vmatpush1.bf16.msra.mxu0 0
        %1076 = vmatprep.subr.bf16.mxu0 0
        %1077 = vmatpush1.bf16.msra.mxu0 0
        %1078 = vmatprep.subr.bf16.mxu0 0
        %1079 = vmatpush1.bf16.msra.mxu0 0
        %1080 = vmatprep.subr.bf16.mxu0 0
        %1081 = vmatpush1.bf16.msra.mxu0 0
        %1082 = vmatprep.subr.bf16.mxu0 0
        %1083 = vmatpush1.bf16.msra.mxu0 0
        %1084 = vmatprep.subr.bf16.mxu0 0
        %1085 = vmatpush1.bf16.msra.mxu0 0
        %1086 = vmatprep.subr.bf16.mxu0 0
        %1087 = vmatpush1.bf16.msra.mxu0 0
        %1088 = vmatprep.subr.bf16.mxu0 0
        %1089 = vmatpush1.bf16.msra.mxu0 0
        %1090 = vmatprep.mubr.bf16.mxu0 0
        %1091 = vmatmul.mubr.bf16.gmra.mrb[0].mxu0 %v1047
        %v1092 = vpop.f32.mrb[0].mxu0
        %v1093 = vadd.f32 0.0, %v1092
        %v1094 = vpop.f32.mrb[0].mxu0
        %v1095 = vpop.f32.mrb[0].mxu0
        %v1096 = vadd.f32 0.0, %v1095
        %v1097 = vpop.f32.mrb[0].mxu0
        %1098 = vmatprep.mubr.bf16.mxu0 0
        %1099 = vmatmul.mubr.bf16.gmra.mrb[0].mxu0 %v1050
        %v1100 = vpop.f32.mrb[0].mxu0
        %v1101 = vadd.f32 0.0, %v1100
        %v1102 = vpop.f32.mrb[0].mxu0
        %v1103 = vpop.f32.mrb[0].mxu0
        %v1104 = vadd.f32 0.0, %v1103
        %v1105 = vpop.f32.mrb[0].mxu0
        %1106 = vmatprep.mubr.bf16.mxu0 0
        %1107 = vmatmul.mubr.bf16.gmra.mrb[0].mxu0 %v1053
        %v1108 = vpop.f32.mrb[0].mxu0
        %v1109 = vadd.f32 0.0, %v1108
        %v1110 = vpop.f32.mrb[0].mxu0
        %v1111 = vpop.f32.mrb[0].mxu0
        %v1112 = vadd.f32 0.0, %v1111
        %v1113 = vpop.f32.mrb[0].mxu0
        %1114 = vmatprep.mubr.bf16.mxu0 0
        %1115 = vmatmul.mubr.bf16.gmra.mrb[0].mxu0 %v1056
        %v1116 = vpop.f32.mrb[0].mxu0
        %v1117 = vadd.f32 0.0, %v1116
        %v1118 = vpop.f32.mrb[0].mxu0
        %v1119 = vpop.f32.mrb[0].mxu0
        %v1120 = vadd.f32 0.0, %v1119
        %v1121 = vpop.f32.mrb[0].mxu0
        %1122 = vdwg.mxu0
        %v1123 = vadd.f32 %v1001, %v1093
        %v1124 = vadd.f32 %v1002, %v1096
        %v1125 = vadd.f32 %v1003, %v1101
        %v1126 = vadd.f32 %v1004, %v1104
        %v1127 = vadd.f32 %v1005, %v1109
        %v1128 = vadd.f32 %v1006, %v1112
        %v1129 = vadd.f32 %v1007, %v1117
        %v1130 = vadd.f32 %v1008, %v1120
        %v1131 = vld [vmem:[%s7] sm:$0xff]
        %v1132 = vld [vmem:[%s7 + $0x8] sm:$0xff]
        %v1133 = vld [vmem:[%s7 + $0x10] sm:$0xff]
        %v1134 = vld [vmem:[%s7 + $0x18] sm:$0xff]
        %v1135 = vld [vmem:[%s7 + $0x20] sm:$0xff]
        %v1136 = vld [vmem:[%s7 + $0x28] sm:$0xff]
        %v1137 = vld [vmem:[%s7 + $0x30] sm:$0xff]
        %v1138 = vld [vmem:[%s7 + $0x38] sm:$0xff]
        %1140 = vset.pattern.permute.xlu0 0
        %1141 = vperm.xlu0 %1140, %v1131
        %v1142 = vpop.permute.xlu0 %1141
        %1145 = vset.pattern.permute.xlu0 0
        %1146 = vperm.xlu0 %1145, %v1132
        %v1147 = vpop.permute.xlu0 %1146
        %1150 = vset.pattern.permute.xlu0 0
        %1151 = vperm.xlu0 %1150, %v1133
        %v1152 = vpop.permute.xlu0 %1151
        %1155 = vset.pattern.permute.xlu0 0
        %1156 = vperm.xlu0 %1155, %v1134
        %v1157 = vpop.permute.xlu0 %1156
        %1160 = vset.pattern.permute.xlu0 0
        %1161 = vperm.xlu0 %1160, %v1135
        %v1162 = vpop.permute.xlu0 %1161
        %1165 = vset.pattern.permute.xlu0 0
        %1166 = vperm.xlu0 %1165, %v1136
        %v1167 = vpop.permute.xlu0 %1166
        %1170 = vset.pattern.permute.xlu0 0
        %1171 = vperm.xlu0 %1170, %v1137
        %v1172 = vpop.permute.xlu0 %1171
        %1175 = vset.pattern.permute.xlu0 0
        %1176 = vperm.xlu0 %1175, %v1138
        %v1177 = vpop.permute.xlu0 %1176
        %v1179 = vadd.f32 %v1123, %v1142
        %v1180 = vadd.f32 %v1124, %v1147
        %v1181 = vadd.f32 %v1125, %v1152
        %v1182 = vadd.f32 %v1126, %v1157
        %v1183 = vadd.f32 %v1127, %v1162
        %v1184 = vadd.f32 %v1128, %v1167
        %v1185 = vadd.f32 %v1129, %v1172
        %v1186 = vadd.f32 %v1130, %v1177
        %v1187 = vxor.u32 %v1179, 2147483648
        %v1188 = vxor.u32 %v1180, 2147483648
        %v1189 = vxor.u32 %v1181, 2147483648
        %v1190 = vxor.u32 %v1182, 2147483648
        %v1191 = vmul.f32 %v1187, 1.442695
        %v1192 = vpow.pop %v1191
        %v1193 = vmul.f32 %v1188, 1.442695
        %v1194 = vpow.pop %v1193
        %v1195 = vmul.f32 %v1189, 1.442695
        %v1196 = vpow.pop %v1195
        %v1197 = vmul.f32 %v1190, 1.442695
        %v1198 = vpow.pop %v1197
        %v1199 = vadd.f32 %v1192, 1.0
        %v1200 = vadd.f32 %v1194, 1.0
        %v1201 = vadd.f32 %v1196, 1.0
        %v1202 = vadd.f32 %v1198, 1.0
        %v1203 = vrcp.pop %v1199
        %v1204 = vmul.f32 1.0, %v1203
        %v1205 = vrcp.pop %v1200
        %v1206 = vmul.f32 1.0, %v1205
        %v1207 = vrcp.pop %v1201
        %v1208 = vmul.f32 1.0, %v1207
        %v1209 = vrcp.pop %v1202
        %v1210 = vmul.f32 1.0, %v1209
        %v1211 = vtanh.pop %v1183
        %v1212 = vtanh.pop %v1184
        %v1213 = vtanh.pop %v1185
        %v1214 = vtanh.pop %v1186
        %v1215 = vmul.f32 %v1204, %v1211
        %v1216 = vmul.f32 %v1206, %v1212
        %v1217 = vmul.f32 %v1208, %v1213
        %v1218 = vmul.f32 %v1210, %v1214
        %v1219 = vpack.c.bf16 %v1216, %v1215
        %v1220 = vpack.c.bf16 %v1218, %v1217
        %v1221 = vld [vmem:[%s8] sm:$0xf]
        %v1222 = vld [vmem:[%s8 + $0x4] sm:$0xf]
        %v1223 = vld [vmem:[%s8 + $0x8] sm:$0xf]
        %v1224 = vld [vmem:[%s8 + $0xc] sm:$0xf]
        %v1225 = vld [vmem:[%s8 + $0x10] sm:$0xf]
        %v1226 = vld [vmem:[%s8 + $0x14] sm:$0xf]
        %v1227 = vld [vmem:[%s8 + $0x18] sm:$0xf]
        %v1228 = vld [vmem:[%s8 + $0x1c] sm:$0xf]
        %v1229 = vld [vmem:[%s9] sm:$0xff]
        %v1230 = vld [vmem:[%s9 + $0x8] sm:$0xff]
        %v1231 = vld [vmem:[%s9 + $0x10] sm:$0xff]
        %v1232 = vld [vmem:[%s9 + $0x18] sm:$0xff]
        %v1233 = vld [vmem:[%s9 + $0x20] sm:$0xff]
        %v1234 = vld [vmem:[%s9 + $0x28] sm:$0xff]
        %v1235 = vld [vmem:[%s9 + $0x30] sm:$0xff]
        %v1236 = vld [vmem:[%s9 + $0x38] sm:$0xff]
        %1238 = vset.pattern.permute.xlu0 0
        %1239 = vperm.xlu0 %1238, %v1229
        %v1240 = vpop.permute.xlu0 %1239
        %1243 = vset.pattern.permute.xlu0 0
        %1244 = vperm.xlu0 %1243, %v1230
        %v1245 = vpop.permute.xlu0 %1244
        %1248 = vset.pattern.permute.xlu0 0
        %1249 = vperm.xlu0 %1248, %v1231
        %v1250 = vpop.permute.xlu0 %1249
        %1253 = vset.pattern.permute.xlu0 0
        %1254 = vperm.xlu0 %1253, %v1232
        %v1255 = vpop.permute.xlu0 %1254
        %1258 = vset.pattern.permute.xlu0 0
        %1259 = vperm.xlu0 %1258, %v1233
        %v1260 = vpop.permute.xlu0 %1259
        %1263 = vset.pattern.permute.xlu0 0
        %1264 = vperm.xlu0 %1263, %v1234
        %v1265 = vpop.permute.xlu0 %1264
        %1268 = vset.pattern.permute.xlu0 0
        %1269 = vperm.xlu0 %1268, %v1235
        %v1270 = vpop.permute.xlu0 %1269
        %1273 = vset.pattern.permute.xlu0 0
        %1274 = vperm.xlu0 %1273, %v1236
        %v1275 = vpop.permute.xlu0 %1274
        %v1285 = vunpack.c.l.b16 %v1221
        %v1286 = vunpack.c.l.b16 %v1222
        %v1287 = vunpack.c.l.b16 %v1223
        %v1288 = vunpack.c.l.b16 %v1224
        %v1289 = vunpack.c.l.b16 %v1225
        %v1290 = vunpack.c.l.b16 %v1226
        %v1291 = vunpack.c.l.b16 %v1227
        %v1292 = vunpack.c.l.b16 %v1228
        %v1293 = vpack.c.b16 %v1286, %v1285
        %v1294 = vpack.c.b16 %v1288, %v1287
        %v1295 = vpack.c.b16 %v1290, %v1289
        %v1296 = vpack.c.b16 %v1292, %v1291
        %v1298 = vsel %vm718, %v1293, 0
        %v1301 = vsel %vm718, %v1294, 0
        %v1304 = vsel %vm718, %v1295, 0
        %v1307 = vsel %vm718, %v1296, 0
        %1309 = vmatprep.subr.bf16.mxu0 0
        %1310 = vmatpush1.bf16.msra.mxu0 %v1219
        %1311 = vmatprep.subr.bf16.mxu0 0
        %1312 = vmatpush1.bf16.msra.mxu0 %v1220
        %1313 = vmatprep.subr.bf16.mxu0 0
        %1314 = vmatpush1.bf16.msra.mxu0 0
        %1315 = vmatprep.subr.bf16.mxu0 0
        %1316 = vmatpush1.bf16.msra.mxu0 0
        %1317 = vmatprep.subr.bf16.mxu0 0
        %1318 = vmatpush1.bf16.msra.mxu0 0
        %1319 = vmatprep.subr.bf16.mxu0 0
        %1320 = vmatpush1.bf16.msra.mxu0 0
        %1321 = vmatprep.subr.bf16.mxu0 0
        %1322 = vmatpush1.bf16.msra.mxu0 0
        %1323 = vmatprep.subr.bf16.mxu0 0
        %1324 = vmatpush1.bf16.msra.mxu0 0
        %1325 = vmatprep.subr.bf16.mxu0 0
        %1326 = vmatpush1.bf16.msra.mxu0 0
        %1327 = vmatprep.subr.bf16.mxu0 0
        %1328 = vmatpush1.bf16.msra.mxu0 0
        %1329 = vmatprep.subr.bf16.mxu0 0
        %1330 = vmatpush1.bf16.msra.mxu0 0
        %1331 = vmatprep.subr.bf16.mxu0 0
        %1332 = vmatpush1.bf16.msra.mxu0 0
        %1333 = vmatprep.subr.bf16.mxu0 0
        %1334 = vmatpush1.bf16.msra.mxu0 0
        %1335 = vmatprep.subr.bf16.mxu0 0
        %1336 = vmatpush1.bf16.msra.mxu0 0
        %1337 = vmatprep.subr.bf16.mxu0 0
        %1338 = vmatpush1.bf16.msra.mxu0 0
        %1339 = vmatprep.subr.bf16.mxu0 0
        %1340 = vmatpush1.bf16.msra.mxu0 0
        %1341 = vmatprep.mubr.bf16.mxu0 0
        %1342 = vmatmul.mubr.bf16.gmra.mrb[0].mxu0 %v1298
        %v1343 = vpop.f32.mrb[0].mxu0
        %v1344 = vadd.f32 %v1240, %v1343
        %v1345 = vpop.f32.mrb[0].mxu0
        %v1346 = vpop.f32.mrb[0].mxu0
        %v1347 = vadd.f32 %v1245, %v1346
        %v1348 = vpop.f32.mrb[0].mxu0
        %1349 = vmatprep.mubr.bf16.mxu0 0
        %1350 = vmatmul.mubr.bf16.gmra.mrb[0].mxu0 %v1301
        %v1351 = vpop.f32.mrb[0].mxu0
        %v1352 = vadd.f32 %v1250, %v1351
        %v1353 = vpop.f32.mrb[0].mxu0
        %v1354 = vpop.f32.mrb[0].mxu0
        %v1355 = vadd.f32 %v1255, %v1354
        %v1356 = vpop.f32.mrb[0].mxu0
        %1357 = vmatprep.mubr.bf16.mxu0 0
        %1358 = vmatmul.mubr.bf16.gmra.mrb[0].mxu0 %v1304
        %v1359 = vpop.f32.mrb[0].mxu0
        %v1360 = vadd.f32 %v1260, %v1359
        %v1361 = vpop.f32.mrb[0].mxu0
        %v1362 = vpop.f32.mrb[0].mxu0
        %v1363 = vadd.f32 %v1265, %v1362
        %v1364 = vpop.f32.mrb[0].mxu0
        %1365 = vmatprep.mubr.bf16.mxu0 0
        %1366 = vmatmul.mubr.bf16.gmra.mrb[0].mxu0 %v1307
        %v1367 = vpop.f32.mrb[0].mxu0
        %v1368 = vadd.f32 %v1270, %v1367
        %v1369 = vpop.f32.mrb[0].mxu0
        %v1370 = vpop.f32.mrb[0].mxu0
        %v1371 = vadd.f32 %v1275, %v1370
        %v1372 = vpop.f32.mrb[0].mxu0
        %1373 = vdwg.mxu0
        %v1374 = vadd.f32 %v1344, %v567
        %v1375 = vadd.f32 %v1347, %v568
        %v1376 = vadd.f32 %v1352, %v569
        %v1377 = vadd.f32 %v1355, %v570
        %v1378 = vmul.f32 %v1374, 0.70710677
        %v1379 = vmul.f32 %v1375, 0.70710677
        %v1380 = vmul.f32 %v1376, 0.70710677
        %v1381 = vmul.f32 %v1377, 0.70710677
        %1382 = vst [vmem:[%s488] sm:$0xff] %v1378
        %1383 = vst [vmem:[%s488 + $0x8] sm:$0xff] %v1379
        %1384 = vst [vmem:[%s488 + $0x10] sm:$0xff] %v1380
        %1385 = vst [vmem:[%s488 + $0x18] sm:$0xff] %v1381
        %1386 = vst [vmem:[%s488 + $0x20] sm:$0xff] %v1360
        %1387 = vst [vmem:[%s488 + $0x28] sm:$0xff] %v1363
        %1388 = vst [vmem:[%s488 + $0x30] sm:$0xff] %v1368
        %1389 = vst [vmem:[%s488 + $0x38] sm:$0xff] %v1371
        %s1390 = sand.u32 %s301, 1
        %s1391 = scalar_lea.sflag [#allocation3], %s1390
        %s1392 = sand.u32 %s301, 1
        %s1393 = smul.addr %s1392, 64
        %s1394 = scalar_lea.vmem [#allocation2], %s1393
        // Predicated region
        $region61: #{tpu_custom_call.1} parent=59 // pred_check
          %p1395 = pneg %p311
        $region62: #{tpu_custom_call.1} parent=59 // pred_check_branch
          %1397 = sbr.rel (%p1395) target = $region64
        $region63: #{tpu_custom_call.1} parent=59 // pred_region
          %s1399 = ssub.s32 1024, 1024
          %1400 = vsyncadd %s1391, %s1399
          %s1401 = smul.addr %s28, 8
          %s1402 = sadd.s32 %s29, %s1401
          %s1403 = smul.addr %s1402, 128
          %s1404 = scalar_lea.hbm %s10, %s1403
          %s1405 = sshll.u32 %s1394, 4
          %s1406 = int_to_ptr.vmem [resolvable:$true] %s1405
          %1411 = dma.vmem_to_hbm [thread:$0]  %s1406, 1024, %s1404, %s1391, 128, 128, 8
        $region64: #{tpu_custom_call.1} parent=59 // pred_fallthru
          _
      $region60: #{tpu_custom_call.1} parent=5 // pred_fallthru
        _
      %p1412 = scmp.le.s32.totalorder 2, %s19
      // Predicated region
      $region65: #{tpu_custom_call.1} parent=5 // pred_check
        %p1413 = pneg %p1412
      $region66: #{tpu_custom_call.1} parent=5 // pred_check_branch
        %1415 = sbr.rel (%p1413) target = $region68
      $region67: #{tpu_custom_call.1} parent=5 // pred_region
        %s1416 = ssub.s32 %s19, 2
        // Predicated region
        $region69: #{tpu_custom_call.1} parent=67 // pred_check
          %p1417 = pneg %p317
        $region70: #{tpu_custom_call.1} parent=67 // pred_check_branch
          %1419 = sbr.rel (%p1417) target = $region72
        $region71: #{tpu_custom_call.1} parent=67 // pred_region
          %s1420 = sand.u32 %s302, 1
          %s1421 = scalar_lea.sflag [#allocation3], %s1420
          %s1422 = sand.u32 %s302, 1
          %s1423 = smul.addr %s1422, 64
          %s1424 = scalar_lea.vmem [#allocation2], %s1423
          %1425 = dma.done %s1421, 1024
        $region72: #{tpu_custom_call.1} parent=67 // pred_fallthru
          _
      $region68: #{tpu_custom_call.1} parent=5 // pred_fallthru
        _
    $region6: #{tpu_custom_call.1} parent=1 // loop_footer
      %s23 = sadd.s32 1, %s19
    $region7: #{tpu_custom_call.1} parent=1 // loop_footer_branch
      %18 = sbr.rel target = $region3
    $region8: #{tpu_custom_call.1} parent=1 // loop_exit
      _
    %1426 = vsyncpa [#allocation3], 1
    %s1427 = scalar_lea.sflag [#allocation3], 1
    %1428 = vsyncpa %s1427, 1

</llo_original>
